<compile_context>
chip_gen: v6e
topology: v6e:2x2x1
jax: 0.10.0
libtpu: 0.0.40
codegen_flags: <defaults>
</compile_context>

<pallas_src>
import functools

import jax
import jax.numpy as jnp
import numpy as np
from jax import lax
from jax.experimental import pallas as pl
from jax.experimental.pallas import tpu as pltpu


def _lstm2_kernel(idx_ref, emb_ref, wih0_ref, b0_ref, whh0_ref, w1_ref, b1_ref,
                  out_ref, g0_ref, *, T, Np):
    """2-layer LSTM over the full sequence, emitting only h at idx.

    idx_ref : (Np, 1)      int32  last-non-NULL position per row (-1 for pad rows)
    emb_ref : (T*Np, D)    f32    time-major flattened embedded inputs
    wih0    : (D, 4H)      f32    layer-0 input weights (pre-transposed)
    b0      : (1, 4H)      f32    layer-0 combined bias (b_ih + b_hh)
    whh0    : (H, 4H)      f32    layer-0 hidden weights (pre-transposed)
    w1      : (2H, 4H)     f32    layer-1 stacked [Wih1; Whh1] (pre-transposed)
    b1      : (1, 4H)      f32    layer-1 combined bias
    out_ref : (Np, H)      f32    layer-1 hidden state at t == idx
    g0_ref  : (T*Np, 4H)   f32    VMEM scratch: hoisted layer-0 input projection
    """
    H = whh0_ref.shape[0]

    # ---- hoisted layer-0 input projection: one streaming MXU matmul ----
    g0_ref[...] = (jnp.dot(emb_ref[...], wih0_ref[...],
                           preferred_element_type=jnp.float32)
                   + b0_ref[...])

    # Hoist the bias broadcast out of the loop (broadcast_in_dim is not CSE'd).
    b1b = jnp.broadcast_to(b1_ref[...], (Np, 4 * H))
    idx = idx_ref[...]                                   # (Np, 1) int32

    def gates_to_hc(g, c_prev):
        # PyTorch LSTM gate order: input, forget, cell (g), output.
        i_g = jax.nn.sigmoid(g[:, 0 * H:1 * H])
        f_g = jax.nn.sigmoid(g[:, 1 * H:2 * H])
        g_g = jnp.tanh(g[:, 2 * H:3 * H])
        o_g = jax.nn.sigmoid(g[:, 3 * H:4 * H])
        c_new = f_g * c_prev + i_g * g_g
        h_new = o_g * jnp.tanh(c_new)
        return h_new, c_new

    zeros = jnp.zeros((Np, H), jnp.float32)
    h0 = c0 = h1 = c1 = out = zeros

    # Static Python loop: fully unrolled (T small & static), state in vregs.
    for t in range(T):
        # layer 0: precomputed x-projection + recurrent dot
        g0 = (g0_ref[pl.ds(t * Np, Np), :]
              + jnp.dot(h0, whh0_ref[...], preferred_element_type=jnp.float32))
        h0, c0 = gates_to_hc(g0, c0)

        # layer 1: fused [x | h] dot with pre-stacked weights (contraction 2H)
        xh = jnp.concatenate([h0, h1], axis=1)            # (Np, 2H)
        g1 = jnp.dot(xh, w1_ref[...],
                     preferred_element_type=jnp.float32) + b1b
        h1, c1 = gates_to_hc(g1, c1)

        # in-kernel gather: keep h1 only where t == idx[row]
        out = jnp.where(idx == t, h1, out)

    out_ref[...] = out


def run_lstm_kernel(idx_col, emb_flat, wih0_T, b0, whh0_T, w1_T, b1, *, T, Np, H):
    kernel = functools.partial(_lstm2_kernel, T=T, Np=Np)
    vmem = pl.BlockSpec(memory_space=pltpu.MemorySpace.VMEM)
    return pl.pallas_call(
        kernel,
        out_shape=jax.ShapeDtypeStruct((Np, H), jnp.float32),
        in_specs=[vmem] * 7,
        out_specs=vmem,
        scratch_shapes=[pltpu.VMEM((T * Np, 4 * H), jnp.float32)],
    )(idx_col, emb_flat, wih0_T, b0, whh0_T, w1_T, b1)


def lstm_encoder_forward(x_tokens, params, null_idx):
    """Pallas implementation of LstmEncoder.forward.

    x_tokens: (N, T) int32 token ids -> returns (N, H) f32.
    """
    N, T = x_tokens.shape
    D = params["wih0_T"].shape[0]
    H = params["whh0_T"].shape[0]

    # --- idx: last non-NULL position.  Matches the PyTorch double loop under
    # the usual assumption that NULL padding is contiguous at the end (the
    # reference takes the FIRST non-NULL -> NULL transition). ---
    cond = (x_tokens[:, :-1] != null_idx) & (x_tokens[:, 1:] == null_idx)
    has_end = jnp.any(cond, axis=1)
    idx = jnp.where(has_end, jnp.argmax(cond, axis=1), T - 1).astype(jnp.int32)

    # --- embedding lookup (glue) ---
    emb = params["embed"][x_tokens]                        # (N, T, D)

    # --- pad batch to a multiple of 8 sublanes ---
    Np = int(-(-N // 8) * 8)
    pad = Np - N
    emb_p = jnp.pad(emb, ((0, pad), (0, 0), (0, 0)))       # (Np, T, D)
    idx_p = jnp.pad(idx, (0, pad), constant_values=-1)     # pad rows never selected
    idx_col = idx_p.reshape(Np, 1)

    # time-major, batch-inner flatten: row t*Np + n == (t, n)
    emb_flat = jnp.transpose(emb_p, (1, 0, 2)).reshape(T * Np, D)

    # pre-stacked layer-1 weights: [Wih1; Whh1] -> (2H, 4H)
    w1_T = jnp.concatenate([params["wih1_T"], params["whh1_T"]], axis=0)

    out_p = run_lstm_kernel(idx_col, emb_flat,
                            params["wih0_T"], params["b0"],
                            params["whh0_T"], w1_T, params["b1"],
                            T=T, Np=Np, H=H)               # (Np, H)
    return out_p[:N]


def pure_jax_reference(x_tokens, params, null_idx):
    """Plain-JAX reference of the same forward pass (for validation)."""
    N, T = x_tokens.shape
    H = params["whh0_T"].shape[0]
    emb = params["embed"][x_tokens]                        # (N, T, D)

    def dot(a, b):
        return jnp.dot(a, b, precision=lax.Precision.HIGHEST)

    def cell(x_t, h, c, wih_T, whh_T, b):
        g = dot(x_t, wih_T) + dot(h, whh_T) + b
        i = jax.nn.sigmoid(g[:, 0 * H:1 * H])
        f = jax.nn.sigmoid(g[:, 1 * H:2 * H])
        gg = jnp.tanh(g[:, 2 * H:3 * H])
        o = jax.nn.sigmoid(g[:, 3 * H:4 * H])
        c = f * c + i * gg
        h = o * jnp.tanh(c)
        return h, c

    h0 = c0 = h1 = c1 = jnp.zeros((N, H), jnp.float32)
    hs = []
    for t in range(T):
        h0, c0 = cell(emb[:, t, :], h0, c0,
                      params["wih0_T"], params["whh0_T"], params["b0"])
        h1, c1 = cell(h0, h1, c1,
                      params["wih1_T"], params["whh1_T"], params["b1"])
        hs.append(h1)
    hs = jnp.stack(hs, axis=1)                             # (N, T, H)

    cond = (x_tokens[:, :-1] != null_idx) & (x_tokens[:, 1:] == null_idx)
    idx = jnp.where(jnp.any(cond, axis=1), jnp.argmax(cond, axis=1), T - 1)
    return hs[jnp.arange(N), idx]


def init_params(key, vocab_size, wordvec_dim, rnn_dim):
    """Deterministic parameter init mimicking nn.Embedding / nn.LSTM defaults."""
    D, H = wordvec_dim, rnn_dim
    k = 1.0 / np.sqrt(H)
    keys = jax.random.split(key, 9)

    def uni(kk, shape):
        return jax.random.uniform(kk, shape, jnp.float32, -k, k)

    embed = jax.random.normal(keys[0], (vocab_size, D), jnp.float32)
    # layer 0 (input size D), layer 1 (input size H); stored pre-transposed.
    wih0_T = uni(keys[1], (D, 4 * H))
    whh0_T = uni(keys[2], (H, 4 * H))
    b0 = uni(keys[3], (1, 4 * H)) + uni(keys[4], (1, 4 * H))   # b_ih + b_hh
    wih1_T = uni(keys[5], (H, 4 * H))
    whh1_T = uni(keys[6], (H, 4 * H))
    b1 = uni(keys[7], (1, 4 * H)) + uni(keys[8], (1, 4 * H))
    return dict(embed=embed, wih0_T=wih0_T, whh0_T=whh0_T, b0=b0,
                wih1_T=wih1_T, whh1_T=whh1_T, b1=b1)


if __name__ == "__main__":
    # token_to_idx with the special tokens the module expects
    token_to_idx = {"<NULL>": 0, "<START>": 1, "<END>": 2}
    for w in range(13):
        token_to_idx[f"w{w}"] = 3 + w
    vocab_size = len(token_to_idx)      # 16
    NULL = token_to_idx["<NULL>"]
    START, END = token_to_idx["<START>"], token_to_idx["<END>"]

    N, T = 2, 8
    wordvec_dim, rnn_dim = 64, 64       # small, VMEM-resident shapes

    key = jax.random.PRNGKey(0)
    pkey, xkey = jax.random.split(key)
    params = init_params(pkey, vocab_size, wordvec_dim, rnn_dim)

    # Build token sequences with NULL padding (variable lengths).
    body = jax.random.randint(xkey, (N, T), 3, vocab_size, dtype=jnp.int32)
    x = np.array(body)
    x[0, 0] = START; x[0, 4] = END; x[0, 5:] = NULL      # length-5 sequence
    x[1, 0] = START; x[1, T - 1] = END                   # full-length sequence
    x = jnp.asarray(x, dtype=jnp.int32)

    fwd = jax.jit(functools.partial(lstm_encoder_forward, null_idx=NULL))
    out = jax.block_until_ready(fwd(x, params))

    ref = pure_jax_reference(x, params, NULL)
    assert out.shape == (N, rnn_dim), out.shape
    np.testing.assert_allclose(np.asarray(out), np.asarray(ref),
                               atol=1e-4, rtol=1e-4)
    print("KERNEL_OK")
</pallas_src>

<mosaic_0001>
module attributes {stable_mosaic.version = 11 : i64} {
  func.func @_lstm2_kernel(%arg0: memref<8x1xi32, #tpu.memory_space<vmem>>, %arg1: memref<64x64xf32, #tpu.memory_space<vmem>>, %arg2: memref<64x256xf32, #tpu.memory_space<vmem>>, %arg3: memref<1x256xf32, #tpu.memory_space<vmem>>, %arg4: memref<64x256xf32, #tpu.memory_space<vmem>>, %arg5: memref<128x256xf32, #tpu.memory_space<vmem>>, %arg6: memref<1x256xf32, #tpu.memory_space<vmem>>, %arg7: memref<8x64xf32, #tpu.memory_space<vmem>>, %arg8: memref<64x256xf32, #tpu.memory_space<vmem>>) attributes {dimension_semantics = [], scalar_prefetch = 0 : i64, scratch_operands = 1 : i64, tpu.core_type = #tpu.core_type<tc>} {
    %c0 = arith.constant 0 : index
    %c0_0 = arith.constant 0 : index
    %0 = vector.load %arg1[%c0, %c0_0] : memref<64x64xf32, #tpu.memory_space<vmem>>, vector<64x64xf32>
    %c0_1 = arith.constant 0 : index
    %c0_2 = arith.constant 0 : index
    %1 = vector.load %arg2[%c0_1, %c0_2] : memref<64x256xf32, #tpu.memory_space<vmem>>, vector<64x256xf32>
    %cst = arith.constant dense<0.000000e+00> : vector<64x256xf32>
    %2 = tpu.matmul %0, %1, %cst {dimension_numbers = #tpu.dot_dimension_numbers<[1], [0], [0], [1], [0, 0, 1, 1], [], []>} : vector<64x64xf32>, vector<64x256xf32>, vector<64x256xf32> -> vector<64x256xf32>
    %c0_3 = arith.constant 0 : index
    %c0_4 = arith.constant 0 : index
    %3 = vector.load %arg3[%c0_3, %c0_4] : memref<1x256xf32, #tpu.memory_space<vmem>>, vector<1x256xf32>
    %4 = vector.broadcast %3 : vector<1x256xf32> to vector<64x256xf32>
    %5 = arith.addf %2, %4 : vector<64x256xf32>
    %c0_5 = arith.constant 0 : index
    %c0_6 = arith.constant 0 : index
    %6 = vector.load %arg8[%c0_5, %c0_6] : memref<64x256xf32, #tpu.memory_space<vmem>>, vector<64x256xf32>
    tpu.vector_store %arg8[%c0_5, %c0_6], %5 {strides = array<i32>} : memref<64x256xf32, #tpu.memory_space<vmem>>, vector<64x256xf32>,
    %c0_7 = arith.constant 0 : index
    %c0_8 = arith.constant 0 : index
    %7 = vector.load %arg6[%c0_7, %c0_8] : memref<1x256xf32, #tpu.memory_space<vmem>>, vector<1x256xf32>
    %8 = vector.shape_cast %7 : vector<1x256xf32> to vector<1x256xf32>
    %9 = vector.broadcast %8 : vector<1x256xf32> to vector<8x256xf32>
    %c0_9 = arith.constant 0 : index
    %c0_10 = arith.constant 0 : index
    %10 = vector.load %arg0[%c0_9, %c0_10] : memref<8x1xi32, #tpu.memory_space<vmem>>, vector<8x1xi32>
    %cst_11 = arith.constant 0.000000e+00 : f32
    %11 = vector.broadcast %cst_11 : f32 to vector<8x64xf32>
    %c0_12 = arith.constant 0 : index
    %c0_13 = arith.constant 0 : index
    %12 = vector.load %arg8[%c0_12, %c0_13] : memref<64x256xf32, #tpu.memory_space<vmem>>, vector<8x256xf32>
    %c0_14 = arith.constant 0 : index
    %c0_15 = arith.constant 0 : index
    %13 = vector.load %arg4[%c0_14, %c0_15] : memref<64x256xf32, #tpu.memory_space<vmem>>, vector<64x256xf32>
    %cst_16 = arith.constant dense<0.000000e+00> : vector<8x256xf32>
    %14 = tpu.matmul %11, %13, %cst_16 {dimension_numbers = #tpu.dot_dimension_numbers<[1], [0], [0], [1], [0, 0, 1, 1], [], []>} : vector<8x64xf32>, vector<64x256xf32>, vector<8x256xf32> -> vector<8x256xf32>
    %15 = arith.addf %12, %14 : vector<8x256xf32>
    %16 = vector.extract_strided_slice %15 {offsets = [0, 0], sizes = [8, 64], strides = [1, 1]} : vector<8x256xf32> to vector<8x64xf32>
    %17 = arith.negf %16 : vector<8x64xf32>
    %18 = math.exp %17 : vector<8x64xf32>
    %cst_17 = arith.constant 1.000000e+00 : f32
    %19 = vector.broadcast %cst_17 : f32 to vector<8x64xf32>
    %20 = arith.addf %19, %18 : vector<8x64xf32>
    %21 = arith.divf %19, %20 : vector<8x64xf32>
    %22 = vector.extract_strided_slice %15 {offsets = [0, 64], sizes = [8, 64], strides = [1, 1]} : vector<8x256xf32> to vector<8x64xf32>
    %23 = arith.negf %22 : vector<8x64xf32>
    %24 = math.exp %23 : vector<8x64xf32>
    %cst_18 = arith.constant 1.000000e+00 : f32
    %25 = vector.broadcast %cst_18 : f32 to vector<8x64xf32>
    %26 = arith.addf %25, %24 : vector<8x64xf32>
    %27 = arith.divf %25, %26 : vector<8x64xf32>
    %28 = vector.extract_strided_slice %15 {offsets = [0, 128], sizes = [8, 64], strides = [1, 1]} : vector<8x256xf32> to vector<8x64xf32>
    %29 = math.tanh %28 : vector<8x64xf32>
    %30 = vector.extract_strided_slice %15 {offsets = [0, 192], sizes = [8, 64], strides = [1, 1]} : vector<8x256xf32> to vector<8x64xf32>
    %31 = arith.negf %30 : vector<8x64xf32>
    %32 = math.exp %31 : vector<8x64xf32>
    %cst_19 = arith.constant 1.000000e+00 : f32
    %33 = vector.broadcast %cst_19 : f32 to vector<8x64xf32>
    %34 = arith.addf %33, %32 : vector<8x64xf32>
    %35 = arith.divf %33, %34 : vector<8x64xf32>
    %36 = arith.mulf %27, %11 : vector<8x64xf32>
    %37 = arith.mulf %21, %29 : vector<8x64xf32>
    %38 = arith.addf %36, %37 : vector<8x64xf32>
    %39 = math.tanh %38 : vector<8x64xf32>
    %40 = arith.mulf %35, %39 : vector<8x64xf32>
    %41 = tpu.concatenate %40, %11 in 1 : vector<8x64xf32>, vector<8x64xf32> -> vector<8x128xf32>
    %c0_20 = arith.constant 0 : index
    %c0_21 = arith.constant 0 : index
    %42 = vector.load %arg5[%c0_20, %c0_21] : memref<128x256xf32, #tpu.memory_space<vmem>>, vector<128x256xf32>
    %cst_22 = arith.constant dense<0.000000e+00> : vector<8x256xf32>
    %43 = tpu.matmul %41, %42, %cst_22 {dimension_numbers = #tpu.dot_dimension_numbers<[1], [0], [0], [1], [0, 0, 1, 1], [], []>} : vector<8x128xf32>, vector<128x256xf32>, vector<8x256xf32> -> vector<8x256xf32>
    %44 = arith.addf %43, %9 : vector<8x256xf32>
    %45 = vector.extract_strided_slice %44 {offsets = [0, 0], sizes = [8, 64], strides = [1, 1]} : vector<8x256xf32> to vector<8x64xf32>
    %46 = arith.negf %45 : vector<8x64xf32>
    %47 = math.exp %46 : vector<8x64xf32>
    %cst_23 = arith.constant 1.000000e+00 : f32
    %48 = vector.broadcast %cst_23 : f32 to vector<8x64xf32>
    %49 = arith.addf %48, %47 : vector<8x64xf32>
    %50 = arith.divf %48, %49 : vector<8x64xf32>
    %51 = vector.extract_strided_slice %44 {offsets = [0, 64], sizes = [8, 64], strides = [1, 1]} : vector<8x256xf32> to vector<8x64xf32>
    %52 = arith.negf %51 : vector<8x64xf32>
    %53 = math.exp %52 : vector<8x64xf32>
    %cst_24 = arith.constant 1.000000e+00 : f32
    %54 = vector.broadcast %cst_24 : f32 to vector<8x64xf32>
    %55 = arith.addf %54, %53 : vector<8x64xf32>
    %56 = arith.divf %54, %55 : vector<8x64xf32>
    %57 = vector.extract_strided_slice %44 {offsets = [0, 128], sizes = [8, 64], strides = [1, 1]} : vector<8x256xf32> to vector<8x64xf32>
    %58 = math.tanh %57 : vector<8x64xf32>
    %59 = vector.extract_strided_slice %44 {offsets = [0, 192], sizes = [8, 64], strides = [1, 1]} : vector<8x256xf32> to vector<8x64xf32>
    %60 = arith.negf %59 : vector<8x64xf32>
    %61 = math.exp %60 : vector<8x64xf32>
    %cst_25 = arith.constant 1.000000e+00 : f32
    %62 = vector.broadcast %cst_25 : f32 to vector<8x64xf32>
    %63 = arith.addf %62, %61 : vector<8x64xf32>
    %64 = arith.divf %62, %63 : vector<8x64xf32>
    %65 = arith.mulf %56, %11 : vector<8x64xf32>
    %66 = arith.mulf %50, %58 : vector<8x64xf32>
    %67 = arith.addf %65, %66 : vector<8x64xf32>
    %68 = math.tanh %67 : vector<8x64xf32>
    %69 = arith.mulf %64, %68 : vector<8x64xf32>
    %c0_i32 = arith.constant 0 : i32
    %70 = vector.broadcast %c0_i32 : i32 to vector<8x1xi32>
    %71 = arith.cmpi eq, %10, %70 : vector<8x1xi32>
    %72 = vector.shape_cast %71 : vector<8x1xi1> to vector<8x1xi1>
    %73 = vector.broadcast %72 : vector<8x1xi1> to vector<8x64xi1>
    %74 = arith.select %73, %69, %11 : vector<8x64xi1>, vector<8x64xf32>
    %c8 = arith.constant 8 : index
    %c0_26 = arith.constant 0 : index
    %75 = vector.load %arg8[%c8, %c0_26] : memref<64x256xf32, #tpu.memory_space<vmem>>, vector<8x256xf32>
    %c0_27 = arith.constant 0 : index
    %c0_28 = arith.constant 0 : index
    %76 = vector.load %arg4[%c0_27, %c0_28] : memref<64x256xf32, #tpu.memory_space<vmem>>, vector<64x256xf32>
    %cst_29 = arith.constant dense<0.000000e+00> : vector<8x256xf32>
    %77 = tpu.matmul %40, %76, %cst_29 {dimension_numbers = #tpu.dot_dimension_numbers<[1], [0], [0], [1], [0, 0, 1, 1], [], []>} : vector<8x64xf32>, vector<64x256xf32>, vector<8x256xf32> -> vector<8x256xf32>
    %78 = arith.addf %75, %77 : vector<8x256xf32>
    %79 = vector.extract_strided_slice %78 {offsets = [0, 0], sizes = [8, 64], strides = [1, 1]} : vector<8x256xf32> to vector<8x64xf32>
    %80 = arith.negf %79 : vector<8x64xf32>
    %81 = math.exp %80 : vector<8x64xf32>
    %cst_30 = arith.constant 1.000000e+00 : f32
    %82 = vector.broadcast %cst_30 : f32 to vector<8x64xf32>
    %83 = arith.addf %82, %81 : vector<8x64xf32>
    %84 = arith.divf %82, %83 : vector<8x64xf32>
    %85 = vector.extract_strided_slice %78 {offsets = [0, 64], sizes = [8, 64], strides = [1, 1]} : vector<8x256xf32> to vector<8x64xf32>
    %86 = arith.negf %85 : vector<8x64xf32>
    %87 = math.exp %86 : vector<8x64xf32>
    %cst_31 = arith.constant 1.000000e+00 : f32
    %88 = vector.broadcast %cst_31 : f32 to vector<8x64xf32>
    %89 = arith.addf %88, %87 : vector<8x64xf32>
    %90 = arith.divf %88, %89 : vector<8x64xf32>
    %91 = vector.extract_strided_slice %78 {offsets = [0, 128], sizes = [8, 64], strides = [1, 1]} : vector<8x256xf32> to vector<8x64xf32>
    %92 = math.tanh %91 : vector<8x64xf32>
    %93 = vector.extract_strided_slice %78 {offsets = [0, 192], sizes = [8, 64], strides = [1, 1]} : vector<8x256xf32> to vector<8x64xf32>
    %94 = arith.negf %93 : vector<8x64xf32>
    %95 = math.exp %94 : vector<8x64xf32>
    %cst_32 = arith.constant 1.000000e+00 : f32
    %96 = vector.broadcast %cst_32 : f32 to vector<8x64xf32>
    %97 = arith.addf %96, %95 : vector<8x64xf32>
    %98 = arith.divf %96, %97 : vector<8x64xf32>
    %99 = arith.mulf %90, %38 : vector<8x64xf32>
    %100 = arith.mulf %84, %92 : vector<8x64xf32>
    %101 = arith.addf %99, %100 : vector<8x64xf32>
    %102 = math.tanh %101 : vector<8x64xf32>
    %103 = arith.mulf %98, %102 : vector<8x64xf32>
    %104 = tpu.concatenate %103, %69 in 1 : vector<8x64xf32>, vector<8x64xf32> -> vector<8x128xf32>
    %c0_33 = arith.constant 0 : index
    %c0_34 = arith.constant 0 : index
    %105 = vector.load %arg5[%c0_33, %c0_34] : memref<128x256xf32, #tpu.memory_space<vmem>>, vector<128x256xf32>
    %cst_35 = arith.constant dense<0.000000e+00> : vector<8x256xf32>
    %106 = tpu.matmul %104, %105, %cst_35 {dimension_numbers = #tpu.dot_dimension_numbers<[1], [0], [0], [1], [0, 0, 1, 1], [], []>} : vector<8x128xf32>, vector<128x256xf32>, vector<8x256xf32> -> vector<8x256xf32>
    %107 = arith.addf %106, %9 : vector<8x256xf32>
    %108 = vector.extract_strided_slice %107 {offsets = [0, 0], sizes = [8, 64], strides = [1, 1]} : vector<8x256xf32> to vector<8x64xf32>
    %109 = arith.negf %108 : vector<8x64xf32>
    %110 = math.exp %109 : vector<8x64xf32>
    %cst_36 = arith.constant 1.000000e+00 : f32
    %111 = vector.broadcast %cst_36 : f32 to vector<8x64xf32>
    %112 = arith.addf %111, %110 : vector<8x64xf32>
    %113 = arith.divf %111, %112 : vector<8x64xf32>
    %114 = vector.extract_strided_slice %107 {offsets = [0, 64], sizes = [8, 64], strides = [1, 1]} : vector<8x256xf32> to vector<8x64xf32>
    %115 = arith.negf %114 : vector<8x64xf32>
    %116 = math.exp %115 : vector<8x64xf32>
    %cst_37 = arith.constant 1.000000e+00 : f32
    %117 = vector.broadcast %cst_37 : f32 to vector<8x64xf32>
    %118 = arith.addf %117, %116 : vector<8x64xf32>
    %119 = arith.divf %117, %118 : vector<8x64xf32>
    %120 = vector.extract_strided_slice %107 {offsets = [0, 128], sizes = [8, 64], strides = [1, 1]} : vector<8x256xf32> to vector<8x64xf32>
    %121 = math.tanh %120 : vector<8x64xf32>
    %122 = vector.extract_strided_slice %107 {offsets = [0, 192], sizes = [8, 64], strides = [1, 1]} : vector<8x256xf32> to vector<8x64xf32>
    %123 = arith.negf %122 : vector<8x64xf32>
    %124 = math.exp %123 : vector<8x64xf32>
    %cst_38 = arith.constant 1.000000e+00 : f32
    %125 = vector.broadcast %cst_38 : f32 to vector<8x64xf32>
    %126 = arith.addf %125, %124 : vector<8x64xf32>
    %127 = arith.divf %125, %126 : vector<8x64xf32>
    %128 = arith.mulf %119, %67 : vector<8x64xf32>
    %129 = arith.mulf %113, %121 : vector<8x64xf32>
    %130 = arith.addf %128, %129 : vector<8x64xf32>
    %131 = math.tanh %130 : vector<8x64xf32>
    %132 = arith.mulf %127, %131 : vector<8x64xf32>
    %c1_i32 = arith.constant 1 : i32
    %133 = vector.broadcast %c1_i32 : i32 to vector<8x1xi32>
    %134 = arith.cmpi eq, %10, %133 : vector<8x1xi32>
    %135 = vector.shape_cast %134 : vector<8x1xi1> to vector<8x1xi1>
    %136 = vector.broadcast %135 : vector<8x1xi1> to vector<8x64xi1>
    %137 = arith.select %136, %132, %74 : vector<8x64xi1>, vector<8x64xf32>
    %c16 = arith.constant 16 : index
    %c0_39 = arith.constant 0 : index
    %138 = vector.load %arg8[%c16, %c0_39] : memref<64x256xf32, #tpu.memory_space<vmem>>, vector<8x256xf32>
    %c0_40 = arith.constant 0 : index
    %c0_41 = arith.constant 0 : index
    %139 = vector.load %arg4[%c0_40, %c0_41] : memref<64x256xf32, #tpu.memory_space<vmem>>, vector<64x256xf32>
    %cst_42 = arith.constant dense<0.000000e+00> : vector<8x256xf32>
    %140 = tpu.matmul %103, %139, %cst_42 {dimension_numbers = #tpu.dot_dimension_numbers<[1], [0], [0], [1], [0, 0, 1, 1], [], []>} : vector<8x64xf32>, vector<64x256xf32>, vector<8x256xf32> -> vector<8x256xf32>
    %141 = arith.addf %138, %140 : vector<8x256xf32>
    %142 = vector.extract_strided_slice %141 {offsets = [0, 0], sizes = [8, 64], strides = [1, 1]} : vector<8x256xf32> to vector<8x64xf32>
    %143 = arith.negf %142 : vector<8x64xf32>
    %144 = math.exp %143 : vector<8x64xf32>
    %cst_43 = arith.constant 1.000000e+00 : f32
    %145 = vector.broadcast %cst_43 : f32 to vector<8x64xf32>
    %146 = arith.addf %145, %144 : vector<8x64xf32>
    %147 = arith.divf %145, %146 : vector<8x64xf32>
    %148 = vector.extract_strided_slice %141 {offsets = [0, 64], sizes = [8, 64], strides = [1, 1]} : vector<8x256xf32> to vector<8x64xf32>
    %149 = arith.negf %148 : vector<8x64xf32>
    %150 = math.exp %149 : vector<8x64xf32>
    %cst_44 = arith.constant 1.000000e+00 : f32
    %151 = vector.broadcast %cst_44 : f32 to vector<8x64xf32>
    %152 = arith.addf %151, %150 : vector<8x64xf32>
    %153 = arith.divf %151, %152 : vector<8x64xf32>
    %154 = vector.extract_strided_slice %141 {offsets = [0, 128], sizes = [8, 64], strides = [1, 1]} : vector<8x256xf32> to vector<8x64xf32>
    %155 = math.tanh %154 : vector<8x64xf32>
    %156 = vector.extract_strided_slice %141 {offsets = [0, 192], sizes = [8, 64], strides = [1, 1]} : vector<8x256xf32> to vector<8x64xf32>
    %157 = arith.negf %156 : vector<8x64xf32>
    %158 = math.exp %157 : vector<8x64xf32>
    %cst_45 = arith.constant 1.000000e+00 : f32
    %159 = vector.broadcast %cst_45 : f32 to vector<8x64xf32>
    %160 = arith.addf %159, %158 : vector<8x64xf32>
    %161 = arith.divf %159, %160 : vector<8x64xf32>
    %162 = arith.mulf %153, %101 : vector<8x64xf32>
    %163 = arith.mulf %147, %155 : vector<8x64xf32>
    %164 = arith.addf %162, %163 : vector<8x64xf32>
    %165 = math.tanh %164 : vector<8x64xf32>
    %166 = arith.mulf %161, %165 : vector<8x64xf32>
    %167 = tpu.concatenate %166, %132 in 1 : vector<8x64xf32>, vector<8x64xf32> -> vector<8x128xf32>
    %c0_46 = arith.constant 0 : index
    %c0_47 = arith.constant 0 : index
    %168 = vector.load %arg5[%c0_46, %c0_47] : memref<128x256xf32, #tpu.memory_space<vmem>>, vector<128x256xf32>
    %cst_48 = arith.constant dense<0.000000e+00> : vector<8x256xf32>
    %169 = tpu.matmul %167, %168, %cst_48 {dimension_numbers = #tpu.dot_dimension_numbers<[1], [0], [0], [1], [0, 0, 1, 1], [], []>} : vector<8x128xf32>, vector<128x256xf32>, vector<8x256xf32> -> vector<8x256xf32>
    %170 = arith.addf %169, %9 : vector<8x256xf32>
    %171 = vector.extract_strided_slice %170 {offsets = [0, 0], sizes = [8, 64], strides = [1, 1]} : vector<8x256xf32> to vector<8x64xf32>
    %172 = arith.negf %171 : vector<8x64xf32>
    %173 = math.exp %172 : vector<8x64xf32>
    %cst_49 = arith.constant 1.000000e+00 : f32
    %174 = vector.broadcast %cst_49 : f32 to vector<8x64xf32>
    %175 = arith.addf %174, %173 : vector<8x64xf32>
    %176 = arith.divf %174, %175 : vector<8x64xf32>
    %177 = vector.extract_strided_slice %170 {offsets = [0, 64], sizes = [8, 64], strides = [1, 1]} : vector<8x256xf32> to vector<8x64xf32>
    %178 = arith.negf %177 : vector<8x64xf32>
    %179 = math.exp %178 : vector<8x64xf32>
    %cst_50 = arith.constant 1.000000e+00 : f32
    %180 = vector.broadcast %cst_50 : f32 to vector<8x64xf32>
    %181 = arith.addf %180, %179 : vector<8x64xf32>
    %182 = arith.divf %180, %181 : vector<8x64xf32>
    %183 = vector.extract_strided_slice %170 {offsets = [0, 128], sizes = [8, 64], strides = [1, 1]} : vector<8x256xf32> to vector<8x64xf32>
    %184 = math.tanh %183 : vector<8x64xf32>
    %185 = vector.extract_strided_slice %170 {offsets = [0, 192], sizes = [8, 64], strides = [1, 1]} : vector<8x256xf32> to vector<8x64xf32>
    %186 = arith.negf %185 : vector<8x64xf32>
    %187 = math.exp %186 : vector<8x64xf32>
    %cst_51 = arith.constant 1.000000e+00 : f32
    %188 = vector.broadcast %cst_51 : f32 to vector<8x64xf32>
    %189 = arith.addf %188, %187 : vector<8x64xf32>
    %190 = arith.divf %188, %189 : vector<8x64xf32>
    %191 = arith.mulf %182, %130 : vector<8x64xf32>
    %192 = arith.mulf %176, %184 : vector<8x64xf32>
    %193 = arith.addf %191, %192 : vector<8x64xf32>
    %194 = math.tanh %193 : vector<8x64xf32>
    %195 = arith.mulf %190, %194 : vector<8x64xf32>
    %c2_i32 = arith.constant 2 : i32
    %196 = vector.broadcast %c2_i32 : i32 to vector<8x1xi32>
    %197 = arith.cmpi eq, %10, %196 : vector<8x1xi32>
    %198 = vector.shape_cast %197 : vector<8x1xi1> to vector<8x1xi1>
    %199 = vector.broadcast %198 : vector<8x1xi1> to vector<8x64xi1>
    %200 = arith.select %199, %195, %137 : vector<8x64xi1>, vector<8x64xf32>
    %c24 = arith.constant 24 : index
    %c0_52 = arith.constant 0 : index
    %201 = vector.load %arg8[%c24, %c0_52] : memref<64x256xf32, #tpu.memory_space<vmem>>, vector<8x256xf32>
    %c0_53 = arith.constant 0 : index
    %c0_54 = arith.constant 0 : index
    %202 = vector.load %arg4[%c0_53, %c0_54] : memref<64x256xf32, #tpu.memory_space<vmem>>, vector<64x256xf32>
    %cst_55 = arith.constant dense<0.000000e+00> : vector<8x256xf32>
    %203 = tpu.matmul %166, %202, %cst_55 {dimension_numbers = #tpu.dot_dimension_numbers<[1], [0], [0], [1], [0, 0, 1, 1], [], []>} : vector<8x64xf32>, vector<64x256xf32>, vector<8x256xf32> -> vector<8x256xf32>
    %204 = arith.addf %201, %203 : vector<8x256xf32>
    %205 = vector.extract_strided_slice %204 {offsets = [0, 0], sizes = [8, 64], strides = [1, 1]} : vector<8x256xf32> to vector<8x64xf32>
    %206 = arith.negf %205 : vector<8x64xf32>
    %207 = math.exp %206 : vector<8x64xf32>
    %cst_56 = arith.constant 1.000000e+00 : f32
    %208 = vector.broadcast %cst_56 : f32 to vector<8x64xf32>
    %209 = arith.addf %208, %207 : vector<8x64xf32>
    %210 = arith.divf %208, %209 : vector<8x64xf32>
    %211 = vector.extract_strided_slice %204 {offsets = [0, 64], sizes = [8, 64], strides = [1, 1]} : vector<8x256xf32> to vector<8x64xf32>
    %212 = arith.negf %211 : vector<8x64xf32>
    %213 = math.exp %212 : vector<8x64xf32>
    %cst_57 = arith.constant 1.000000e+00 : f32
    %214 = vector.broadcast %cst_57 : f32 to vector<8x64xf32>
    %215 = arith.addf %214, %213 : vector<8x64xf32>
    %216 = arith.divf %214, %215 : vector<8x64xf32>
    %217 = vector.extract_strided_slice %204 {offsets = [0, 128], sizes = [8, 64], strides = [1, 1]} : vector<8x256xf32> to vector<8x64xf32>
    %218 = math.tanh %217 : vector<8x64xf32>
    %219 = vector.extract_strided_slice %204 {offsets = [0, 192], sizes = [8, 64], strides = [1, 1]} : vector<8x256xf32> to vector<8x64xf32>
    %220 = arith.negf %219 : vector<8x64xf32>
    %221 = math.exp %220 : vector<8x64xf32>
    %cst_58 = arith.constant 1.000000e+00 : f32
    %222 = vector.broadcast %cst_58 : f32 to vector<8x64xf32>
    %223 = arith.addf %222, %221 : vector<8x64xf32>
    %224 = arith.divf %222, %223 : vector<8x64xf32>
    %225 = arith.mulf %216, %164 : vector<8x64xf32>
    %226 = arith.mulf %210, %218 : vector<8x64xf32>
    %227 = arith.addf %225, %226 : vector<8x64xf32>
    %228 = math.tanh %227 : vector<8x64xf32>
    %229 = arith.mulf %224, %228 : vector<8x64xf32>
    %230 = tpu.concatenate %229, %195 in 1 : vector<8x64xf32>, vector<8x64xf32> -> vector<8x128xf32>
    %c0_59 = arith.constant 0 : index
    %c0_60 = arith.constant 0 : index
    %231 = vector.load %arg5[%c0_59, %c0_60] : memref<128x256xf32, #tpu.memory_space<vmem>>, vector<128x256xf32>
    %cst_61 = arith.constant dense<0.000000e+00> : vector<8x256xf32>
    %232 = tpu.matmul %230, %231, %cst_61 {dimension_numbers = #tpu.dot_dimension_numbers<[1], [0], [0], [1], [0, 0, 1, 1], [], []>} : vector<8x128xf32>, vector<128x256xf32>, vector<8x256xf32> -> vector<8x256xf32>
    %233 = arith.addf %232, %9 : vector<8x256xf32>
    %234 = vector.extract_strided_slice %233 {offsets = [0, 0], sizes = [8, 64], strides = [1, 1]} : vector<8x256xf32> to vector<8x64xf32>
    %235 = arith.negf %234 : vector<8x64xf32>
    %236 = math.exp %235 : vector<8x64xf32>
    %cst_62 = arith.constant 1.000000e+00 : f32
    %237 = vector.broadcast %cst_62 : f32 to vector<8x64xf32>
    %238 = arith.addf %237, %236 : vector<8x64xf32>
    %239 = arith.divf %237, %238 : vector<8x64xf32>
    %240 = vector.extract_strided_slice %233 {offsets = [0, 64], sizes = [8, 64], strides = [1, 1]} : vector<8x256xf32> to vector<8x64xf32>
    %241 = arith.negf %240 : vector<8x64xf32>
    %242 = math.exp %241 : vector<8x64xf32>
    %cst_63 = arith.constant 1.000000e+00 : f32
    %243 = vector.broadcast %cst_63 : f32 to vector<8x64xf32>
    %244 = arith.addf %243, %242 : vector<8x64xf32>
    %245 = arith.divf %243, %244 : vector<8x64xf32>
    %246 = vector.extract_strided_slice %233 {offsets = [0, 128], sizes = [8, 64], strides = [1, 1]} : vector<8x256xf32> to vector<8x64xf32>
    %247 = math.tanh %246 : vector<8x64xf32>
    %248 = vector.extract_strided_slice %233 {offsets = [0, 192], sizes = [8, 64], strides = [1, 1]} : vector<8x256xf32> to vector<8x64xf32>
    %249 = arith.negf %248 : vector<8x64xf32>
    %250 = math.exp %249 : vector<8x64xf32>
    %cst_64 = arith.constant 1.000000e+00 : f32
    %251 = vector.broadcast %cst_64 : f32 to vector<8x64xf32>
    %252 = arith.addf %251, %250 : vector<8x64xf32>
    %253 = arith.divf %251, %252 : vector<8x64xf32>
    %254 = arith.mulf %245, %193 : vector<8x64xf32>
    %255 = arith.mulf %239, %247 : vector<8x64xf32>
    %256 = arith.addf %254, %255 : vector<8x64xf32>
    %257 = math.tanh %256 : vector<8x64xf32>
    %258 = arith.mulf %253, %257 : vector<8x64xf32>
    %c3_i32 = arith.constant 3 : i32
    %259 = vector.broadcast %c3_i32 : i32 to vector<8x1xi32>
    %260 = arith.cmpi eq, %10, %259 : vector<8x1xi32>
    %261 = vector.shape_cast %260 : vector<8x1xi1> to vector<8x1xi1>
    %262 = vector.broadcast %261 : vector<8x1xi1> to vector<8x64xi1>
    %263 = arith.select %262, %258, %200 : vector<8x64xi1>, vector<8x64xf32>
    %c32 = arith.constant 32 : index
    %c0_65 = arith.constant 0 : index
    %264 = vector.load %arg8[%c32, %c0_65] : memref<64x256xf32, #tpu.memory_space<vmem>>, vector<8x256xf32>
    %c0_66 = arith.constant 0 : index
    %c0_67 = arith.constant 0 : index
    %265 = vector.load %arg4[%c0_66, %c0_67] : memref<64x256xf32, #tpu.memory_space<vmem>>, vector<64x256xf32>
    %cst_68 = arith.constant dense<0.000000e+00> : vector<8x256xf32>
    %266 = tpu.matmul %229, %265, %cst_68 {dimension_numbers = #tpu.dot_dimension_numbers<[1], [0], [0], [1], [0, 0, 1, 1], [], []>} : vector<8x64xf32>, vector<64x256xf32>, vector<8x256xf32> -> vector<8x256xf32>
    %267 = arith.addf %264, %266 : vector<8x256xf32>
    %268 = vector.extract_strided_slice %267 {offsets = [0, 0], sizes = [8, 64], strides = [1, 1]} : vector<8x256xf32> to vector<8x64xf32>
    %269 = arith.negf %268 : vector<8x64xf32>
    %270 = math.exp %269 : vector<8x64xf32>
    %cst_69 = arith.constant 1.000000e+00 : f32
    %271 = vector.broadcast %cst_69 : f32 to vector<8x64xf32>
    %272 = arith.addf %271, %270 : vector<8x64xf32>
    %273 = arith.divf %271, %272 : vector<8x64xf32>
    %274 = vector.extract_strided_slice %267 {offsets = [0, 64], sizes = [8, 64], strides = [1, 1]} : vector<8x256xf32> to vector<8x64xf32>
    %275 = arith.negf %274 : vector<8x64xf32>
    %276 = math.exp %275 : vector<8x64xf32>
    %cst_70 = arith.constant 1.000000e+00 : f32
    %277 = vector.broadcast %cst_70 : f32 to vector<8x64xf32>
    %278 = arith.addf %277, %276 : vector<8x64xf32>
    %279 = arith.divf %277, %278 : vector<8x64xf32>
    %280 = vector.extract_strided_slice %267 {offsets = [0, 128], sizes = [8, 64], strides = [1, 1]} : vector<8x256xf32> to vector<8x64xf32>
    %281 = math.tanh %280 : vector<8x64xf32>
    %282 = vector.extract_strided_slice %267 {offsets = [0, 192], sizes = [8, 64], strides = [1, 1]} : vector<8x256xf32> to vector<8x64xf32>
    %283 = arith.negf %282 : vector<8x64xf32>
    %284 = math.exp %283 : vector<8x64xf32>
    %cst_71 = arith.constant 1.000000e+00 : f32
    %285 = vector.broadcast %cst_71 : f32 to vector<8x64xf32>
    %286 = arith.addf %285, %284 : vector<8x64xf32>
    %287 = arith.divf %285, %286 : vector<8x64xf32>
    %288 = arith.mulf %279, %227 : vector<8x64xf32>
    %289 = arith.mulf %273, %281 : vector<8x64xf32>
    %290 = arith.addf %288, %289 : vector<8x64xf32>
    %291 = math.tanh %290 : vector<8x64xf32>
    %292 = arith.mulf %287, %291 : vector<8x64xf32>
    %293 = tpu.concatenate %292, %258 in 1 : vector<8x64xf32>, vector<8x64xf32> -> vector<8x128xf32>
    %c0_72 = arith.constant 0 : index
    %c0_73 = arith.constant 0 : index
    %294 = vector.load %arg5[%c0_72, %c0_73] : memref<128x256xf32, #tpu.memory_space<vmem>>, vector<128x256xf32>
    %cst_74 = arith.constant dense<0.000000e+00> : vector<8x256xf32>
    %295 = tpu.matmul %293, %294, %cst_74 {dimension_numbers = #tpu.dot_dimension_numbers<[1], [0], [0], [1], [0, 0, 1, 1], [], []>} : vector<8x128xf32>, vector<128x256xf32>, vector<8x256xf32> -> vector<8x256xf32>
    %296 = arith.addf %295, %9 : vector<8x256xf32>
    %297 = vector.extract_strided_slice %296 {offsets = [0, 0], sizes = [8, 64], strides = [1, 1]} : vector<8x256xf32> to vector<8x64xf32>
    %298 = arith.negf %297 : vector<8x64xf32>
    %299 = math.exp %298 : vector<8x64xf32>
    %cst_75 = arith.constant 1.000000e+00 : f32
    %300 = vector.broadcast %cst_75 : f32 to vector<8x64xf32>
    %301 = arith.addf %300, %299 : vector<8x64xf32>
    %302 = arith.divf %300, %301 : vector<8x64xf32>
    %303 = vector.extract_strided_slice %296 {offsets = [0, 64], sizes = [8, 64], strides = [1, 1]} : vector<8x256xf32> to vector<8x64xf32>
    %304 = arith.negf %303 : vector<8x64xf32>
    %305 = math.exp %304 : vector<8x64xf32>
    %cst_76 = arith.constant 1.000000e+00 : f32
    %306 = vector.broadcast %cst_76 : f32 to vector<8x64xf32>
    %307 = arith.addf %306, %305 : vector<8x64xf32>
    %308 = arith.divf %306, %307 : vector<8x64xf32>
    %309 = vector.extract_strided_slice %296 {offsets = [0, 128], sizes = [8, 64], strides = [1, 1]} : vector<8x256xf32> to vector<8x64xf32>
    %310 = math.tanh %309 : vector<8x64xf32>
    %311 = vector.extract_strided_slice %296 {offsets = [0, 192], sizes = [8, 64], strides = [1, 1]} : vector<8x256xf32> to vector<8x64xf32>
    %312 = arith.negf %311 : vector<8x64xf32>
    %313 = math.exp %312 : vector<8x64xf32>
    %cst_77 = arith.constant 1.000000e+00 : f32
    %314 = vector.broadcast %cst_77 : f32 to vector<8x64xf32>
    %315 = arith.addf %314, %313 : vector<8x64xf32>
    %316 = arith.divf %314, %315 : vector<8x64xf32>
    %317 = arith.mulf %308, %256 : vector<8x64xf32>
    %318 = arith.mulf %302, %310 : vector<8x64xf32>
    %319 = arith.addf %317, %318 : vector<8x64xf32>
    %320 = math.tanh %319 : vector<8x64xf32>
    %321 = arith.mulf %316, %320 : vector<8x64xf32>
    %c4_i32 = arith.constant 4 : i32
    %322 = vector.broadcast %c4_i32 : i32 to vector<8x1xi32>
    %323 = arith.cmpi eq, %10, %322 : vector<8x1xi32>
    %324 = vector.shape_cast %323 : vector<8x1xi1> to vector<8x1xi1>
    %325 = vector.broadcast %324 : vector<8x1xi1> to vector<8x64xi1>
    %326 = arith.select %325, %321, %263 : vector<8x64xi1>, vector<8x64xf32>
    %c40 = arith.constant 40 : index
    %c0_78 = arith.constant 0 : index
    %327 = vector.load %arg8[%c40, %c0_78] : memref<64x256xf32, #tpu.memory_space<vmem>>, vector<8x256xf32>
    %c0_79 = arith.constant 0 : index
    %c0_80 = arith.constant 0 : index
    %328 = vector.load %arg4[%c0_79, %c0_80] : memref<64x256xf32, #tpu.memory_space<vmem>>, vector<64x256xf32>
    %cst_81 = arith.constant dense<0.000000e+00> : vector<8x256xf32>
    %329 = tpu.matmul %292, %328, %cst_81 {dimension_numbers = #tpu.dot_dimension_numbers<[1], [0], [0], [1], [0, 0, 1, 1], [], []>} : vector<8x64xf32>, vector<64x256xf32>, vector<8x256xf32> -> vector<8x256xf32>
    %330 = arith.addf %327, %329 : vector<8x256xf32>
    %331 = vector.extract_strided_slice %330 {offsets = [0, 0], sizes = [8, 64], strides = [1, 1]} : vector<8x256xf32> to vector<8x64xf32>
    %332 = arith.negf %331 : vector<8x64xf32>
    %333 = math.exp %332 : vector<8x64xf32>
    %cst_82 = arith.constant 1.000000e+00 : f32
    %334 = vector.broadcast %cst_82 : f32 to vector<8x64xf32>
    %335 = arith.addf %334, %333 : vector<8x64xf32>
    %336 = arith.divf %334, %335 : vector<8x64xf32>
    %337 = vector.extract_strided_slice %330 {offsets = [0, 64], sizes = [8, 64], strides = [1, 1]} : vector<8x256xf32> to vector<8x64xf32>
    %338 = arith.negf %337 : vector<8x64xf32>
    %339 = math.exp %338 : vector<8x64xf32>
    %cst_83 = arith.constant 1.000000e+00 : f32
    %340 = vector.broadcast %cst_83 : f32 to vector<8x64xf32>
    %341 = arith.addf %340, %339 : vector<8x64xf32>
    %342 = arith.divf %340, %341 : vector<8x64xf32>
    %343 = vector.extract_strided_slice %330 {offsets = [0, 128], sizes = [8, 64], strides = [1, 1]} : vector<8x256xf32> to vector<8x64xf32>
    %344 = math.tanh %343 : vector<8x64xf32>
    %345 = vector.extract_strided_slice %330 {offsets = [0, 192], sizes = [8, 64], strides = [1, 1]} : vector<8x256xf32> to vector<8x64xf32>
    %346 = arith.negf %345 : vector<8x64xf32>
    %347 = math.exp %346 : vector<8x64xf32>
    %cst_84 = arith.constant 1.000000e+00 : f32
    %348 = vector.broadcast %cst_84 : f32 to vector<8x64xf32>
    %349 = arith.addf %348, %347 : vector<8x64xf32>
    %350 = arith.divf %348, %349 : vector<8x64xf32>
    %351 = arith.mulf %342, %290 : vector<8x64xf32>
    %352 = arith.mulf %336, %344 : vector<8x64xf32>
    %353 = arith.addf %351, %352 : vector<8x64xf32>
    %354 = math.tanh %353 : vector<8x64xf32>
    %355 = arith.mulf %350, %354 : vector<8x64xf32>
    %356 = tpu.concatenate %355, %321 in 1 : vector<8x64xf32>, vector<8x64xf32> -> vector<8x128xf32>
    %c0_85 = arith.constant 0 : index
    %c0_86 = arith.constant 0 : index
    %357 = vector.load %arg5[%c0_85, %c0_86] : memref<128x256xf32, #tpu.memory_space<vmem>>, vector<128x256xf32>
    %cst_87 = arith.constant dense<0.000000e+00> : vector<8x256xf32>
    %358 = tpu.matmul %356, %357, %cst_87 {dimension_numbers = #tpu.dot_dimension_numbers<[1], [0], [0], [1], [0, 0, 1, 1], [], []>} : vector<8x128xf32>, vector<128x256xf32>, vector<8x256xf32> -> vector<8x256xf32>
    %359 = arith.addf %358, %9 : vector<8x256xf32>
    %360 = vector.extract_strided_slice %359 {offsets = [0, 0], sizes = [8, 64], strides = [1, 1]} : vector<8x256xf32> to vector<8x64xf32>
    %361 = arith.negf %360 : vector<8x64xf32>
    %362 = math.exp %361 : vector<8x64xf32>
    %cst_88 = arith.constant 1.000000e+00 : f32
    %363 = vector.broadcast %cst_88 : f32 to vector<8x64xf32>
    %364 = arith.addf %363, %362 : vector<8x64xf32>
    %365 = arith.divf %363, %364 : vector<8x64xf32>
    %366 = vector.extract_strided_slice %359 {offsets = [0, 64], sizes = [8, 64], strides = [1, 1]} : vector<8x256xf32> to vector<8x64xf32>
    %367 = arith.negf %366 : vector<8x64xf32>
    %368 = math.exp %367 : vector<8x64xf32>
    %cst_89 = arith.constant 1.000000e+00 : f32
    %369 = vector.broadcast %cst_89 : f32 to vector<8x64xf32>
    %370 = arith.addf %369, %368 : vector<8x64xf32>
    %371 = arith.divf %369, %370 : vector<8x64xf32>
    %372 = vector.extract_strided_slice %359 {offsets = [0, 128], sizes = [8, 64], strides = [1, 1]} : vector<8x256xf32> to vector<8x64xf32>
    %373 = math.tanh %372 : vector<8x64xf32>
    %374 = vector.extract_strided_slice %359 {offsets = [0, 192], sizes = [8, 64], strides = [1, 1]} : vector<8x256xf32> to vector<8x64xf32>
    %375 = arith.negf %374 : vector<8x64xf32>
    %376 = math.exp %375 : vector<8x64xf32>
    %cst_90 = arith.constant 1.000000e+00 : f32
    %377 = vector.broadcast %cst_90 : f32 to vector<8x64xf32>
    %378 = arith.addf %377, %376 : vector<8x64xf32>
    %379 = arith.divf %377, %378 : vector<8x64xf32>
    %380 = arith.mulf %371, %319 : vector<8x64xf32>
    %381 = arith.mulf %365, %373 : vector<8x64xf32>
    %382 = arith.addf %380, %381 : vector<8x64xf32>
    %383 = math.tanh %382 : vector<8x64xf32>
    %384 = arith.mulf %379, %383 : vector<8x64xf32>
    %c5_i32 = arith.constant 5 : i32
    %385 = vector.broadcast %c5_i32 : i32 to vector<8x1xi32>
    %386 = arith.cmpi eq, %10, %385 : vector<8x1xi32>
    %387 = vector.shape_cast %386 : vector<8x1xi1> to vector<8x1xi1>
    %388 = vector.broadcast %387 : vector<8x1xi1> to vector<8x64xi1>
    %389 = arith.select %388, %384, %326 : vector<8x64xi1>, vector<8x64xf32>
    %c48 = arith.constant 48 : index
    %c0_91 = arith.constant 0 : index
    %390 = vector.load %arg8[%c48, %c0_91] : memref<64x256xf32, #tpu.memory_space<vmem>>, vector<8x256xf32>
    %c0_92 = arith.constant 0 : index
    %c0_93 = arith.constant 0 : index
    %391 = vector.load %arg4[%c0_92, %c0_93] : memref<64x256xf32, #tpu.memory_space<vmem>>, vector<64x256xf32>
    %cst_94 = arith.constant dense<0.000000e+00> : vector<8x256xf32>
    %392 = tpu.matmul %355, %391, %cst_94 {dimension_numbers = #tpu.dot_dimension_numbers<[1], [0], [0], [1], [0, 0, 1, 1], [], []>} : vector<8x64xf32>, vector<64x256xf32>, vector<8x256xf32> -> vector<8x256xf32>
    %393 = arith.addf %390, %392 : vector<8x256xf32>
    %394 = vector.extract_strided_slice %393 {offsets = [0, 0], sizes = [8, 64], strides = [1, 1]} : vector<8x256xf32> to vector<8x64xf32>
    %395 = arith.negf %394 : vector<8x64xf32>
    %396 = math.exp %395 : vector<8x64xf32>
    %cst_95 = arith.constant 1.000000e+00 : f32
    %397 = vector.broadcast %cst_95 : f32 to vector<8x64xf32>
    %398 = arith.addf %397, %396 : vector<8x64xf32>
    %399 = arith.divf %397, %398 : vector<8x64xf32>
    %400 = vector.extract_strided_slice %393 {offsets = [0, 64], sizes = [8, 64], strides = [1, 1]} : vector<8x256xf32> to vector<8x64xf32>
    %401 = arith.negf %400 : vector<8x64xf32>
    %402 = math.exp %401 : vector<8x64xf32>
    %cst_96 = arith.constant 1.000000e+00 : f32
    %403 = vector.broadcast %cst_96 : f32 to vector<8x64xf32>
    %404 = arith.addf %403, %402 : vector<8x64xf32>
    %405 = arith.divf %403, %404 : vector<8x64xf32>
    %406 = vector.extract_strided_slice %393 {offsets = [0, 128], sizes = [8, 64], strides = [1, 1]} : vector<8x256xf32> to vector<8x64xf32>
    %407 = math.tanh %406 : vector<8x64xf32>
    %408 = vector.extract_strided_slice %393 {offsets = [0, 192], sizes = [8, 64], strides = [1, 1]} : vector<8x256xf32> to vector<8x64xf32>
    %409 = arith.negf %408 : vector<8x64xf32>
    %410 = math.exp %409 : vector<8x64xf32>
    %cst_97 = arith.constant 1.000000e+00 : f32
    %411 = vector.broadcast %cst_97 : f32 to vector<8x64xf32>
    %412 = arith.addf %411, %410 : vector<8x64xf32>
    %413 = arith.divf %411, %412 : vector<8x64xf32>
    %414 = arith.mulf %405, %353 : vector<8x64xf32>
    %415 = arith.mulf %399, %407 : vector<8x64xf32>
    %416 = arith.addf %414, %415 : vector<8x64xf32>
    %417 = math.tanh %416 : vector<8x64xf32>
    %418 = arith.mulf %413, %417 : vector<8x64xf32>
    %419 = tpu.concatenate %418, %384 in 1 : vector<8x64xf32>, vector<8x64xf32> -> vector<8x128xf32>
    %c0_98 = arith.constant 0 : index
    %c0_99 = arith.constant 0 : index
    %420 = vector.load %arg5[%c0_98, %c0_99] : memref<128x256xf32, #tpu.memory_space<vmem>>, vector<128x256xf32>
    %cst_100 = arith.constant dense<0.000000e+00> : vector<8x256xf32>
    %421 = tpu.matmul %419, %420, %cst_100 {dimension_numbers = #tpu.dot_dimension_numbers<[1], [0], [0], [1], [0, 0, 1, 1], [], []>} : vector<8x128xf32>, vector<128x256xf32>, vector<8x256xf32> -> vector<8x256xf32>
    %422 = arith.addf %421, %9 : vector<8x256xf32>
    %423 = vector.extract_strided_slice %422 {offsets = [0, 0], sizes = [8, 64], strides = [1, 1]} : vector<8x256xf32> to vector<8x64xf32>
    %424 = arith.negf %423 : vector<8x64xf32>
    %425 = math.exp %424 : vector<8x64xf32>
    %cst_101 = arith.constant 1.000000e+00 : f32
    %426 = vector.broadcast %cst_101 : f32 to vector<8x64xf32>
    %427 = arith.addf %426, %425 : vector<8x64xf32>
    %428 = arith.divf %426, %427 : vector<8x64xf32>
    %429 = vector.extract_strided_slice %422 {offsets = [0, 64], sizes = [8, 64], strides = [1, 1]} : vector<8x256xf32> to vector<8x64xf32>
    %430 = arith.negf %429 : vector<8x64xf32>
    %431 = math.exp %430 : vector<8x64xf32>
    %cst_102 = arith.constant 1.000000e+00 : f32
    %432 = vector.broadcast %cst_102 : f32 to vector<8x64xf32>
    %433 = arith.addf %432, %431 : vector<8x64xf32>
    %434 = arith.divf %432, %433 : vector<8x64xf32>
    %435 = vector.extract_strided_slice %422 {offsets = [0, 128], sizes = [8, 64], strides = [1, 1]} : vector<8x256xf32> to vector<8x64xf32>
    %436 = math.tanh %435 : vector<8x64xf32>
    %437 = vector.extract_strided_slice %422 {offsets = [0, 192], sizes = [8, 64], strides = [1, 1]} : vector<8x256xf32> to vector<8x64xf32>
    %438 = arith.negf %437 : vector<8x64xf32>
    %439 = math.exp %438 : vector<8x64xf32>
    %cst_103 = arith.constant 1.000000e+00 : f32
    %440 = vector.broadcast %cst_103 : f32 to vector<8x64xf32>
    %441 = arith.addf %440, %439 : vector<8x64xf32>
    %442 = arith.divf %440, %441 : vector<8x64xf32>
    %443 = arith.mulf %434, %382 : vector<8x64xf32>
    %444 = arith.mulf %428, %436 : vector<8x64xf32>
    %445 = arith.addf %443, %444 : vector<8x64xf32>
    %446 = math.tanh %445 : vector<8x64xf32>
    %447 = arith.mulf %442, %446 : vector<8x64xf32>
    %c6_i32 = arith.constant 6 : i32
    %448 = vector.broadcast %c6_i32 : i32 to vector<8x1xi32>
    %449 = arith.cmpi eq, %10, %448 : vector<8x1xi32>
    %450 = vector.shape_cast %449 : vector<8x1xi1> to vector<8x1xi1>
    %451 = vector.broadcast %450 : vector<8x1xi1> to vector<8x64xi1>
    %452 = arith.select %451, %447, %389 : vector<8x64xi1>, vector<8x64xf32>
    %c56 = arith.constant 56 : index
    %c0_104 = arith.constant 0 : index
    %453 = vector.load %arg8[%c56, %c0_104] : memref<64x256xf32, #tpu.memory_space<vmem>>, vector<8x256xf32>
    %c0_105 = arith.constant 0 : index
    %c0_106 = arith.constant 0 : index
    %454 = vector.load %arg4[%c0_105, %c0_106] : memref<64x256xf32, #tpu.memory_space<vmem>>, vector<64x256xf32>
    %cst_107 = arith.constant dense<0.000000e+00> : vector<8x256xf32>
    %455 = tpu.matmul %418, %454, %cst_107 {dimension_numbers = #tpu.dot_dimension_numbers<[1], [0], [0], [1], [0, 0, 1, 1], [], []>} : vector<8x64xf32>, vector<64x256xf32>, vector<8x256xf32> -> vector<8x256xf32>
    %456 = arith.addf %453, %455 : vector<8x256xf32>
    %457 = vector.extract_strided_slice %456 {offsets = [0, 0], sizes = [8, 64], strides = [1, 1]} : vector<8x256xf32> to vector<8x64xf32>
    %458 = arith.negf %457 : vector<8x64xf32>
    %459 = math.exp %458 : vector<8x64xf32>
    %cst_108 = arith.constant 1.000000e+00 : f32
    %460 = vector.broadcast %cst_108 : f32 to vector<8x64xf32>
    %461 = arith.addf %460, %459 : vector<8x64xf32>
    %462 = arith.divf %460, %461 : vector<8x64xf32>
    %463 = vector.extract_strided_slice %456 {offsets = [0, 64], sizes = [8, 64], strides = [1, 1]} : vector<8x256xf32> to vector<8x64xf32>
    %464 = arith.negf %463 : vector<8x64xf32>
    %465 = math.exp %464 : vector<8x64xf32>
    %cst_109 = arith.constant 1.000000e+00 : f32
    %466 = vector.broadcast %cst_109 : f32 to vector<8x64xf32>
    %467 = arith.addf %466, %465 : vector<8x64xf32>
    %468 = arith.divf %466, %467 : vector<8x64xf32>
    %469 = vector.extract_strided_slice %456 {offsets = [0, 128], sizes = [8, 64], strides = [1, 1]} : vector<8x256xf32> to vector<8x64xf32>
    %470 = math.tanh %469 : vector<8x64xf32>
    %471 = vector.extract_strided_slice %456 {offsets = [0, 192], sizes = [8, 64], strides = [1, 1]} : vector<8x256xf32> to vector<8x64xf32>
    %472 = arith.negf %471 : vector<8x64xf32>
    %473 = math.exp %472 : vector<8x64xf32>
    %cst_110 = arith.constant 1.000000e+00 : f32
    %474 = vector.broadcast %cst_110 : f32 to vector<8x64xf32>
    %475 = arith.addf %474, %473 : vector<8x64xf32>
    %476 = arith.divf %474, %475 : vector<8x64xf32>
    %477 = arith.mulf %468, %416 : vector<8x64xf32>
    %478 = arith.mulf %462, %470 : vector<8x64xf32>
    %479 = arith.addf %477, %478 : vector<8x64xf32>
    %480 = math.tanh %479 : vector<8x64xf32>
    %481 = arith.mulf %476, %480 : vector<8x64xf32>
    %482 = tpu.concatenate %481, %447 in 1 : vector<8x64xf32>, vector<8x64xf32> -> vector<8x128xf32>
    %c0_111 = arith.constant 0 : index
    %c0_112 = arith.constant 0 : index
    %483 = vector.load %arg5[%c0_111, %c0_112] : memref<128x256xf32, #tpu.memory_space<vmem>>, vector<128x256xf32>
    %cst_113 = arith.constant dense<0.000000e+00> : vector<8x256xf32>
    %484 = tpu.matmul %482, %483, %cst_113 {dimension_numbers = #tpu.dot_dimension_numbers<[1], [0], [0], [1], [0, 0, 1, 1], [], []>} : vector<8x128xf32>, vector<128x256xf32>, vector<8x256xf32> -> vector<8x256xf32>
    %485 = arith.addf %484, %9 : vector<8x256xf32>
    %486 = vector.extract_strided_slice %485 {offsets = [0, 0], sizes = [8, 64], strides = [1, 1]} : vector<8x256xf32> to vector<8x64xf32>
    %487 = arith.negf %486 : vector<8x64xf32>
    %488 = math.exp %487 : vector<8x64xf32>
    %cst_114 = arith.constant 1.000000e+00 : f32
    %489 = vector.broadcast %cst_114 : f32 to vector<8x64xf32>
    %490 = arith.addf %489, %488 : vector<8x64xf32>
    %491 = arith.divf %489, %490 : vector<8x64xf32>
    %492 = vector.extract_strided_slice %485 {offsets = [0, 64], sizes = [8, 64], strides = [1, 1]} : vector<8x256xf32> to vector<8x64xf32>
    %493 = arith.negf %492 : vector<8x64xf32>
    %494 = math.exp %493 : vector<8x64xf32>
    %cst_115 = arith.constant 1.000000e+00 : f32
    %495 = vector.broadcast %cst_115 : f32 to vector<8x64xf32>
    %496 = arith.addf %495, %494 : vector<8x64xf32>
    %497 = arith.divf %495, %496 : vector<8x64xf32>
    %498 = vector.extract_strided_slice %485 {offsets = [0, 128], sizes = [8, 64], strides = [1, 1]} : vector<8x256xf32> to vector<8x64xf32>
    %499 = math.tanh %498 : vector<8x64xf32>
    %500 = vector.extract_strided_slice %485 {offsets = [0, 192], sizes = [8, 64], strides = [1, 1]} : vector<8x256xf32> to vector<8x64xf32>
    %501 = arith.negf %500 : vector<8x64xf32>
    %502 = math.exp %501 : vector<8x64xf32>
    %cst_116 = arith.constant 1.000000e+00 : f32
    %503 = vector.broadcast %cst_116 : f32 to vector<8x64xf32>
    %504 = arith.addf %503, %502 : vector<8x64xf32>
    %505 = arith.divf %503, %504 : vector<8x64xf32>
    %506 = arith.mulf %497, %445 : vector<8x64xf32>
    %507 = arith.mulf %491, %499 : vector<8x64xf32>
    %508 = arith.addf %506, %507 : vector<8x64xf32>
    %509 = math.tanh %508 : vector<8x64xf32>
    %510 = arith.mulf %505, %509 : vector<8x64xf32>
    %c7_i32 = arith.constant 7 : i32
    %511 = vector.broadcast %c7_i32 : i32 to vector<8x1xi32>
    %512 = arith.cmpi eq, %10, %511 : vector<8x1xi32>
    %513 = vector.shape_cast %512 : vector<8x1xi1> to vector<8x1xi1>
    %514 = vector.broadcast %513 : vector<8x1xi1> to vector<8x64xi1>
    %515 = arith.select %514, %510, %452 : vector<8x64xi1>, vector<8x64xf32>
    %c0_117 = arith.constant 0 : index
    %c0_118 = arith.constant 0 : index
    %516 = vector.load %arg7[%c0_117, %c0_118] : memref<8x64xf32, #tpu.memory_space<vmem>>, vector<8x64xf32>
    tpu.vector_store %arg7[%c0_117, %c0_118], %515 {strides = array<i32>} : memref<8x64xf32, #tpu.memory_space<vmem>>, vector<8x64xf32>,
    return
  }
}

</mosaic_0001>

<llo_original>
// kernel: lstm_encoder_forward.1
$region0: #{lstm_encoder_forward.1}
  #allocation0 [shape = 'u32[]', space=smem, size = 0x4, offset = 0x4, fixed_abs, tag = 'smem constant byte address 0x4 - core index']
  #allocation1 [shape = 'u32[144,128]{1,0:T(1,128)}', space=vmem, size = 0x12000, scoped, tag = 'internal scratch']
  #allocation2 [shape = 'f32[64,256]{1,0:T(8,128)}', space=vmem, size = 0x10000, scoped, tag = 'scratch operand']
  %s0 = inlined_call_operand.vmem [shape: s32[8,1], index: 0, kind: input, shape index: {}]
  %s1 = inlined_call_operand.vmem [shape: f32[64,64], index: 1, kind: input, shape index: {}]
  %s2 = inlined_call_operand.vmem [shape: f32[64,256], index: 2, kind: input, shape index: {}]
  %s3 = inlined_call_operand.vmem [shape: f32[1,256], index: 3, kind: input, shape index: {}]
  %s4 = inlined_call_operand.vmem [shape: f32[64,256], index: 4, kind: input, shape index: {}]
  %s5 = inlined_call_operand.vmem [shape: f32[128,256], index: 5, kind: input, shape index: {}]
  %s6 = inlined_call_operand.vmem [shape: f32[1,256], index: 6, kind: input, shape index: {}]
  %s7 = inlined_call_operand.vmem [shape: f32[8,64], index: 7, kind: output, shape index: {}]
  %s8 = sld [smem:[#allocation0]]
  $region38: #{lstm_encoder_forward.1} parent=0
    _
  %s10 = ssub.s32 1, %s8
  %s11 = scalar_select 0, %s10, %s8
  // Predicated region
  $region2: #{lstm_encoder_forward.1} parent=0 // pred_check
    _
  $region3: #{lstm_encoder_forward.1} parent=0 // pred_check_branch
    %13 = sbr.rel (0) target = $region5
  $region4: #{lstm_encoder_forward.1} parent=0 // pred_region
    _
  $region5: #{lstm_encoder_forward.1} parent=0 // pred_fallthru
    _
  // Predicated region
  $region6: #{lstm_encoder_forward.1} parent=0 // pred_check
    _
  $region7: #{lstm_encoder_forward.1} parent=0 // pred_check_branch
    %15 = sbr.rel (0) target = $region9
  $region8: #{lstm_encoder_forward.1} parent=0 // pred_region
    _
  $region9: #{lstm_encoder_forward.1} parent=0 // pred_fallthru
    _
  // Predicated region
  $region10: #{lstm_encoder_forward.1} parent=0 // pred_check
    _
  $region11: #{lstm_encoder_forward.1} parent=0 // pred_check_branch
    %17 = sbr.rel (0) target = $region13
  $region12: #{lstm_encoder_forward.1} parent=0 // pred_region
    _
  $region13: #{lstm_encoder_forward.1} parent=0 // pred_fallthru
    _
  // Predicated region
  $region14: #{lstm_encoder_forward.1} parent=0 // pred_check
    _
  $region15: #{lstm_encoder_forward.1} parent=0 // pred_check_branch
    %19 = sbr.rel (0) target = $region17
  $region16: #{lstm_encoder_forward.1} parent=0 // pred_region
    _
  $region17: #{lstm_encoder_forward.1} parent=0 // pred_fallthru
    _
  // Predicated region
  $region18: #{lstm_encoder_forward.1} parent=0 // pred_check
    _
  $region19: #{lstm_encoder_forward.1} parent=0 // pred_check_branch
    %21 = sbr.rel (0) target = $region21
  $region20: #{lstm_encoder_forward.1} parent=0 // pred_region
    _
  $region21: #{lstm_encoder_forward.1} parent=0 // pred_fallthru
    _
  // Predicated region
  $region22: #{lstm_encoder_forward.1} parent=0 // pred_check
    _
  $region23: #{lstm_encoder_forward.1} parent=0 // pred_check_branch
    %23 = sbr.rel (0) target = $region25
  $region24: #{lstm_encoder_forward.1} parent=0 // pred_region
    _
  $region25: #{lstm_encoder_forward.1} parent=0 // pred_fallthru
    _
  // Predicated region
  $region26: #{lstm_encoder_forward.1} parent=0 // pred_check
    _
  $region27: #{lstm_encoder_forward.1} parent=0 // pred_check_branch
    %25 = sbr.rel (0) target = $region29
  $region28: #{lstm_encoder_forward.1} parent=0 // pred_region
    _
  $region29: #{lstm_encoder_forward.1} parent=0 // pred_fallthru
    _
  %v26 = vld [vmem:[%s1] sm:$0xff]
  %v27 = vld [vmem:[%s1 + $0x8] sm:$0xff]
  %v28 = vld [vmem:[%s1 + $0x10] sm:$0xff]
  %v29 = vld [vmem:[%s1 + $0x18] sm:$0xff]
  %v30 = vld [vmem:[%s1 + $0x20] sm:$0xff]
  %v31 = vld [vmem:[%s1 + $0x28] sm:$0xff]
  %v32 = vld [vmem:[%s1 + $0x30] sm:$0xff]
  %v33 = vld [vmem:[%s1 + $0x38] sm:$0xff]
  %v34 = vld [vmem:[%s2] sm:$0xff]
  %v35 = vld [vmem:[%s2 + $0x8] sm:$0xff]
  %v36 = vld [vmem:[%s2 + $0x10] sm:$0xff]
  %v37 = vld [vmem:[%s2 + $0x18] sm:$0xff]
  %v38 = vld [vmem:[%s2 + $0x20] sm:$0xff]
  %v39 = vld [vmem:[%s2 + $0x28] sm:$0xff]
  %v40 = vld [vmem:[%s2 + $0x30] sm:$0xff]
  %v41 = vld [vmem:[%s2 + $0x38] sm:$0xff]
  %v42 = vld [vmem:[%s2 + $0x40] sm:$0xff]
  %v43 = vld [vmem:[%s2 + $0x48] sm:$0xff]
  %v44 = vld [vmem:[%s2 + $0x50] sm:$0xff]
  %v45 = vld [vmem:[%s2 + $0x58] sm:$0xff]
  %v46 = vld [vmem:[%s2 + $0x60] sm:$0xff]
  %v47 = vld [vmem:[%s2 + $0x68] sm:$0xff]
  %v48 = vld [vmem:[%s2 + $0x70] sm:$0xff]
  %v49 = vld [vmem:[%s2 + $0x78] sm:$0xff]
  %v50 = vld [vmem:[%s3] sm:$0x3]
  %v52 = vlaneseq
  %v53 = vshrl.u32 %v52, 7
  %v54 = vsub.s32 0, %v53
  %v55 = vrot.slane %v50, %v54
  %v56 = vlaneseq
  %v57 = vshrl.u32 %v56, 7
  %v58 = vsub.s32 1, %v57
  %v59 = vrot.slane %v50, %v58
  %vm62 = vcmask 523264
  %v64 = vsel %vm62, %v26, 0
  %v67 = vsel %vm62, %v27, 0
  %v70 = vsel %vm62, %v28, 0
  %v73 = vsel %vm62, %v29, 0
  %v76 = vsel %vm62, %v30, 0
  %v79 = vsel %vm62, %v31, 0
  %v82 = vsel %vm62, %v32, 0
  %v85 = vsel %vm62, %v33, 0
  %87 = vmatprep.subr.mxu0 0.0
  %88 = vmatpush1.msra.mxu0 0.0
  %89 = vmatprep.subr.mxu0 0.0
  %90 = vmatpush1.msra.mxu0 0.0
  %91 = vmatprep.subr.mxu0 0.0
  %92 = vmatpush1.msra.mxu0 0.0
  %93 = vmatprep.subr.mxu0 0.0
  %94 = vmatpush1.msra.mxu0 0.0
  %95 = vmatprep.subr.mxu0 0.0
  %96 = vmatpush1.msra.mxu0 0.0
  %97 = vmatprep.subr.mxu0 0.0
  %98 = vmatpush1.msra.mxu0 0.0
  %99 = vmatprep.subr.mxu0 0.0
  %100 = vmatpush1.msra.mxu0 0.0
  %101 = vmatprep.subr.mxu0 0.0
  %102 = vmatpush1.msra.mxu0 0.0
  %103 = vmatprep.subr.mxu0 %v49
  %104 = vmatpush1.msra.mxu0 %v48
  %105 = vmatprep.subr.mxu0 %v47
  %106 = vmatpush1.msra.mxu0 %v46
  %107 = vmatprep.subr.mxu0 %v45
  %108 = vmatpush1.msra.mxu0 %v44
  %109 = vmatprep.subr.mxu0 %v43
  %110 = vmatpush1.msra.mxu0 %v42
  %111 = vmatprep.subr.mxu0 %v41
  %112 = vmatpush1.msra.mxu0 %v40
  %113 = vmatprep.subr.mxu0 %v39
  %114 = vmatpush1.msra.mxu0 %v38
  %115 = vmatprep.subr.mxu0 %v37
  %116 = vmatpush1.msra.mxu0 %v36
  %117 = vmatprep.subr.mxu0 %v35
  %118 = vmatpush1.msra.mxu0 %v34
  %119 = vmatprep.subr.mxu0 0.0
  %120 = vmatpush2.msra.mxu0 0.0
  %121 = vmatprep.subr.mxu0 0.0
  %122 = vmatpush2.msra.mxu0 0.0
  %123 = vmatprep.subr.mxu0 0.0
  %124 = vmatpush2.msra.mxu0 0.0
  %125 = vmatprep.subr.mxu0 0.0
  %126 = vmatpush2.msra.mxu0 0.0
  %127 = vmatprep.subr.mxu0 0.0
  %128 = vmatpush2.msra.mxu0 0.0
  %129 = vmatprep.subr.mxu0 0.0
  %130 = vmatpush2.msra.mxu0 0.0
  %131 = vmatprep.subr.mxu0 0.0
  %132 = vmatpush2.msra.mxu0 0.0
  %133 = vmatprep.subr.mxu0 0.0
  %134 = vmatpush2.msra.mxu0 0.0
  %135 = vmatprep.subr.mxu0 0.0
  %136 = vmatpush2.msra.mxu0 0.0
  %137 = vmatprep.subr.mxu0 0.0
  %138 = vmatpush2.msra.mxu0 0.0
  %139 = vmatprep.subr.mxu0 0.0
  %140 = vmatpush2.msra.mxu0 0.0
  %141 = vmatprep.subr.mxu0 0.0
  %142 = vmatpush2.msra.mxu0 0.0
  %143 = vmatprep.subr.mxu0 0.0
  %144 = vmatpush2.msra.mxu0 0.0
  %145 = vmatprep.subr.mxu0 0.0
  %146 = vmatpush2.msra.mxu0 0.0
  %147 = vmatprep.subr.mxu0 0.0
  %148 = vmatpush2.msra.mxu0 0.0
  %149 = vmatprep.subr.mxu0 0.0
  %150 = vmatpush2.msra.mxu0 0.0
  %151 = vmatprep.mubr.f32.mxu0 0.0
  %152 = vmatmul.mubr.f32.gmra.mxu0 %v64
  %v153 = vpop.f32.mrf.mxu0
  %v154 = vadd.f32 %v55, %v153
  %v155 = vpop.f32.mrf.mxu0
  %v156 = vadd.f32 %v59, %v155
  %157 = vmatprep.mubr.f32.mxu0 0.0
  %158 = vmatmul.mubr.f32.gmra.mxu0 %v67
  %v159 = vpop.f32.mrf.mxu0
  %v160 = vadd.f32 %v55, %v159
  %v161 = vpop.f32.mrf.mxu0
  %v162 = vadd.f32 %v59, %v161
  %163 = vmatprep.mubr.f32.mxu0 0.0
  %164 = vmatmul.mubr.f32.gmra.mxu0 %v70
  %v165 = vpop.f32.mrf.mxu0
  %v166 = vadd.f32 %v55, %v165
  %v167 = vpop.f32.mrf.mxu0
  %v168 = vadd.f32 %v59, %v167
  %169 = vmatprep.mubr.f32.mxu0 0.0
  %170 = vmatmul.mubr.f32.gmra.mxu0 %v73
  %v171 = vpop.f32.mrf.mxu0
  %v172 = vadd.f32 %v55, %v171
  %v173 = vpop.f32.mrf.mxu0
  %v174 = vadd.f32 %v59, %v173
  %175 = vmatprep.mubr.f32.mxu0 0.0
  %176 = vmatmul.mubr.f32.gmra.mxu0 %v76
  %v177 = vpop.f32.mrf.mxu0
  %v178 = vadd.f32 %v55, %v177
  %v179 = vpop.f32.mrf.mxu0
  %v180 = vadd.f32 %v59, %v179
  %181 = vmatprep.mubr.f32.mxu0 0.0
  %182 = vmatmul.mubr.f32.gmra.mxu0 %v79
  %v183 = vpop.f32.mrf.mxu0
  %v184 = vadd.f32 %v55, %v183
  %v185 = vpop.f32.mrf.mxu0
  %v186 = vadd.f32 %v59, %v185
  %187 = vmatprep.mubr.f32.mxu0 0.0
  %188 = vmatmul.mubr.f32.gmra.mxu0 %v82
  %v189 = vpop.f32.mrf.mxu0
  %v190 = vadd.f32 %v55, %v189
  %v191 = vpop.f32.mrf.mxu0
  %v192 = vadd.f32 %v59, %v191
  %193 = vmatprep.mubr.f32.mxu0 0.0
  %194 = vmatmul.mubr.f32.gmra.mxu0 %v85
  %v195 = vpop.f32.mrf.mxu0
  %v196 = vadd.f32 %v55, %v195
  %v197 = vpop.f32.mrf.mxu0
  %v198 = vadd.f32 %v59, %v197
  %199 = vdwg.mxu0
  %200 = vst [vmem:[#allocation2] sm:$0xff] %v154
  %201 = vst [vmem:[#allocation2 + $0x8] sm:$0xff] %v156
  %202 = vst [vmem:[#allocation2 + $0x10] sm:$0xff] %v160
  %203 = vst [vmem:[#allocation2 + $0x18] sm:$0xff] %v162
  %204 = vst [vmem:[#allocation2 + $0x20] sm:$0xff] %v166
  %205 = vst [vmem:[#allocation2 + $0x28] sm:$0xff] %v168
  %206 = vst [vmem:[#allocation2 + $0x30] sm:$0xff] %v172
  %207 = vst [vmem:[#allocation2 + $0x38] sm:$0xff] %v174
  %208 = vst [vmem:[#allocation2 + $0x40] sm:$0xff] %v178
  %209 = vst [vmem:[#allocation2 + $0x48] sm:$0xff] %v180
  %210 = vst [vmem:[#allocation2 + $0x50] sm:$0xff] %v184
  %211 = vst [vmem:[#allocation2 + $0x58] sm:$0xff] %v186
  %212 = vst [vmem:[#allocation2 + $0x60] sm:$0xff] %v190
  %213 = vst [vmem:[#allocation2 + $0x68] sm:$0xff] %v192
  %214 = vst [vmem:[#allocation2 + $0x70] sm:$0xff] %v196
  %215 = vst [vmem:[#allocation2 + $0x78] sm:$0xff] %v198
  %v216 = vld [vmem:[%s6] sm:$0x3]
  %v218 = vlaneseq
  %v219 = vshrl.u32 %v218, 7
  %v220 = vsub.s32 0, %v219
  %v221 = vrot.slane %v216, %v220
  %v222 = vlaneseq
  %v223 = vshrl.u32 %v222, 7
  %v224 = vsub.s32 1, %v223
  %v225 = vrot.slane %v216, %v224
  %v228 = vld [vmem:[%s0] sm:$0xff]
  %v229 = vld [vmem:[#allocation2] sm:$0xff]
  %v230 = vld [vmem:[#allocation2 + $0x8] sm:$0xff]
  %v231 = vld [vmem:[%s4] sm:$0xff]
  %v232 = vld [vmem:[%s4 + $0x8] sm:$0xff]
  %v233 = vld [vmem:[%s4 + $0x10] sm:$0xff]
  %v234 = vld [vmem:[%s4 + $0x18] sm:$0xff]
  %v235 = vld [vmem:[%s4 + $0x20] sm:$0xff]
  %v236 = vld [vmem:[%s4 + $0x28] sm:$0xff]
  %v237 = vld [vmem:[%s4 + $0x30] sm:$0xff]
  %v238 = vld [vmem:[%s4 + $0x38] sm:$0xff]
  %v239 = vld [vmem:[%s4 + $0x40] sm:$0xff]
  %v240 = vld [vmem:[%s4 + $0x48] sm:$0xff]
  %v241 = vld [vmem:[%s4 + $0x50] sm:$0xff]
  %v242 = vld [vmem:[%s4 + $0x58] sm:$0xff]
  %v243 = vld [vmem:[%s4 + $0x60] sm:$0xff]
  %v244 = vld [vmem:[%s4 + $0x68] sm:$0xff]
  %v245 = vld [vmem:[%s4 + $0x70] sm:$0xff]
  %v246 = vld [vmem:[%s4 + $0x78] sm:$0xff]
  %v248 = vsel %vm62, 0.0, 0
  %250 = vmatprep.subr.mxu0 0.0
  %251 = vmatpush1.msra.mxu0 0.0
  %252 = vmatprep.subr.mxu0 0.0
  %253 = vmatpush1.msra.mxu0 0.0
  %254 = vmatprep.subr.mxu0 0.0
  %255 = vmatpush1.msra.mxu0 0.0
  %256 = vmatprep.subr.mxu0 0.0
  %257 = vmatpush1.msra.mxu0 0.0
  %258 = vmatprep.subr.mxu0 0.0
  %259 = vmatpush1.msra.mxu0 0.0
  %260 = vmatprep.subr.mxu0 0.0
  %261 = vmatpush1.msra.mxu0 0.0
  %262 = vmatprep.subr.mxu0 0.0
  %263 = vmatpush1.msra.mxu0 0.0
  %264 = vmatprep.subr.mxu0 0.0
  %265 = vmatpush1.msra.mxu0 0.0
  %266 = vmatprep.subr.mxu0 %v246
  %267 = vmatpush1.msra.mxu0 %v245
  %268 = vmatprep.subr.mxu0 %v244
  %269 = vmatpush1.msra.mxu0 %v243
  %270 = vmatprep.subr.mxu0 %v242
  %271 = vmatpush1.msra.mxu0 %v241
  %272 = vmatprep.subr.mxu0 %v240
  %273 = vmatpush1.msra.mxu0 %v239
  %274 = vmatprep.subr.mxu0 %v238
  %275 = vmatpush1.msra.mxu0 %v237
  %276 = vmatprep.subr.mxu0 %v236
  %277 = vmatpush1.msra.mxu0 %v235
  %278 = vmatprep.subr.mxu0 %v234
  %279 = vmatpush1.msra.mxu0 %v233
  %280 = vmatprep.subr.mxu0 %v232
  %281 = vmatpush1.msra.mxu0 %v231
  %282 = vmatprep.subr.mxu0 0.0
  %283 = vmatpush2.msra.mxu0 0.0
  %284 = vmatprep.subr.mxu0 0.0
  %285 = vmatpush2.msra.mxu0 0.0
  %286 = vmatprep.subr.mxu0 0.0
  %287 = vmatpush2.msra.mxu0 0.0
  %288 = vmatprep.subr.mxu0 0.0
  %289 = vmatpush2.msra.mxu0 0.0
  %290 = vmatprep.subr.mxu0 0.0
  %291 = vmatpush2.msra.mxu0 0.0
  %292 = vmatprep.subr.mxu0 0.0
  %293 = vmatpush2.msra.mxu0 0.0
  %294 = vmatprep.subr.mxu0 0.0
  %295 = vmatpush2.msra.mxu0 0.0
  %296 = vmatprep.subr.mxu0 0.0
  %297 = vmatpush2.msra.mxu0 0.0
  %298 = vmatprep.subr.mxu0 0.0
  %299 = vmatpush2.msra.mxu0 0.0
  %300 = vmatprep.subr.mxu0 0.0
  %301 = vmatpush2.msra.mxu0 0.0
  %302 = vmatprep.subr.mxu0 0.0
  %303 = vmatpush2.msra.mxu0 0.0
  %304 = vmatprep.subr.mxu0 0.0
  %305 = vmatpush2.msra.mxu0 0.0
  %306 = vmatprep.subr.mxu0 0.0
  %307 = vmatpush2.msra.mxu0 0.0
  %308 = vmatprep.subr.mxu0 0.0
  %309 = vmatpush2.msra.mxu0 0.0
  %310 = vmatprep.subr.mxu0 0.0
  %311 = vmatpush2.msra.mxu0 0.0
  %312 = vmatprep.subr.mxu0 0.0
  %313 = vmatpush2.msra.mxu0 0.0
  %314 = vmatprep.mubr.f32.mxu0 0.0
  %315 = vmatmul.mubr.f32.gmra.mxu0 %v248
  %v316 = vpop.f32.mrf.mxu0
  %v317 = vadd.f32 0.0, %v316
  %v318 = vpop.f32.mrf.mxu0
  %v319 = vadd.f32 0.0, %v318
  %320 = vdwg.mxu0
  %v321 = vadd.f32 %v229, %v317
  %v322 = vadd.f32 %v230, %v319
  %v323 = vxor.u32 %v321, 2147483648
  %v324 = vmul.f32 %v323, 1.442695
  %v325 = vpow.pop %v324
  %v326 = vadd.f32 %v325, 1.0
  %v327 = vrcp.pop %v326
  %v328 = vmul.f32 1.0, %v327
  %v329 = vtanh.pop %v322
  %v330 = vxor.u32 %v322, 2147483648
  %v331 = vmul.f32 %v330, 1.442695
  %v332 = vpow.pop %v331
  %v333 = vadd.f32 %v332, 1.0
  %v334 = vrcp.pop %v333
  %v335 = vmul.f32 1.0, %v334
  %v336 = vmul.f32 %v328, 0.0
  %v337 = vmul.f32 %v328, %v329
  %339 = vrot.lane.b32.xlu0 %v337, 64
  %v340 = vpop.permute.xlu0 %339
  %v342 = vadd.f32 %v336, %v340
  %v343 = vtanh.pop %v342
  %v344 = vmul.f32 %v335, %v343
  %346 = vrot.lane.b32.xlu0 %v344, 64
  %v347 = vpop.permute.xlu0 %346
  %v349 = vsel %vm62, %v347, 0.0
  %v350 = vld [vmem:[%s5] sm:$0xff]
  %v351 = vld [vmem:[%s5 + $0x8] sm:$0xff]
  %v352 = vld [vmem:[%s5 + $0x10] sm:$0xff]
  %v353 = vld [vmem:[%s5 + $0x18] sm:$0xff]
  %v354 = vld [vmem:[%s5 + $0x20] sm:$0xff]
  %v355 = vld [vmem:[%s5 + $0x28] sm:$0xff]
  %v356 = vld [vmem:[%s5 + $0x30] sm:$0xff]
  %v357 = vld [vmem:[%s5 + $0x38] sm:$0xff]
  %v358 = vld [vmem:[%s5 + $0x40] sm:$0xff]
  %v359 = vld [vmem:[%s5 + $0x48] sm:$0xff]
  %v360 = vld [vmem:[%s5 + $0x50] sm:$0xff]
  %v361 = vld [vmem:[%s5 + $0x58] sm:$0xff]
  %v362 = vld [vmem:[%s5 + $0x60] sm:$0xff]
  %v363 = vld [vmem:[%s5 + $0x68] sm:$0xff]
  %v364 = vld [vmem:[%s5 + $0x70] sm:$0xff]
  %v365 = vld [vmem:[%s5 + $0x78] sm:$0xff]
  %v366 = vld [vmem:[%s5 + $0x80] sm:$0xff]
  %v367 = vld [vmem:[%s5 + $0x88] sm:$0xff]
  %v368 = vld [vmem:[%s5 + $0x90] sm:$0xff]
  %v369 = vld [vmem:[%s5 + $0x98] sm:$0xff]
  %v370 = vld [vmem:[%s5 + $0xa0] sm:$0xff]
  %v371 = vld [vmem:[%s5 + $0xa8] sm:$0xff]
  %v372 = vld [vmem:[%s5 + $0xb0] sm:$0xff]
  %v373 = vld [vmem:[%s5 + $0xb8] sm:$0xff]
  %v374 = vld [vmem:[%s5 + $0xc0] sm:$0xff]
  %v375 = vld [vmem:[%s5 + $0xc8] sm:$0xff]
  %v376 = vld [vmem:[%s5 + $0xd0] sm:$0xff]
  %v377 = vld [vmem:[%s5 + $0xd8] sm:$0xff]
  %v378 = vld [vmem:[%s5 + $0xe0] sm:$0xff]
  %v379 = vld [vmem:[%s5 + $0xe8] sm:$0xff]
  %v380 = vld [vmem:[%s5 + $0xf0] sm:$0xff]
  %v381 = vld [vmem:[%s5 + $0xf8] sm:$0xff]
  %382 = vmatprep.subr.mxu0 %v381
  %383 = vmatpush1.msra.mxu0 %v380
  %384 = vmatprep.subr.mxu0 %v379
  %385 = vmatpush1.msra.mxu0 %v378
  %386 = vmatprep.subr.mxu0 %v377
  %387 = vmatpush1.msra.mxu0 %v376
  %388 = vmatprep.subr.mxu0 %v375
  %389 = vmatpush1.msra.mxu0 %v374
  %390 = vmatprep.subr.mxu0 %v373
  %391 = vmatpush1.msra.mxu0 %v372
  %392 = vmatprep.subr.mxu0 %v371
  %393 = vmatpush1.msra.mxu0 %v370
  %394 = vmatprep.subr.mxu0 %v369
  %395 = vmatpush1.msra.mxu0 %v368
  %396 = vmatprep.subr.mxu0 %v367
  %397 = vmatpush1.msra.mxu0 %v366
  %398 = vmatprep.subr.mxu0 %v365
  %399 = vmatpush1.msra.mxu0 %v364
  %400 = vmatprep.subr.mxu0 %v363
  %401 = vmatpush1.msra.mxu0 %v362
  %402 = vmatprep.subr.mxu0 %v361
  %403 = vmatpush1.msra.mxu0 %v360
  %404 = vmatprep.subr.mxu0 %v359
  %405 = vmatpush1.msra.mxu0 %v358
  %406 = vmatprep.subr.mxu0 %v357
  %407 = vmatpush1.msra.mxu0 %v356
  %408 = vmatprep.subr.mxu0 %v355
  %409 = vmatpush1.msra.mxu0 %v354
  %410 = vmatprep.subr.mxu0 %v353
  %411 = vmatpush1.msra.mxu0 %v352
  %412 = vmatprep.subr.mxu0 %v351
  %413 = vmatpush1.msra.mxu0 %v350
  %414 = vmatprep.subr.mxu0 0.0
  %415 = vmatpush2.msra.mxu0 0.0
  %416 = vmatprep.subr.mxu0 0.0
  %417 = vmatpush2.msra.mxu0 0.0
  %418 = vmatprep.subr.mxu0 0.0
  %419 = vmatpush2.msra.mxu0 0.0
  %420 = vmatprep.subr.mxu0 0.0
  %421 = vmatpush2.msra.mxu0 0.0
  %422 = vmatprep.subr.mxu0 0.0
  %423 = vmatpush2.msra.mxu0 0.0
  %424 = vmatprep.subr.mxu0 0.0
  %425 = vmatpush2.msra.mxu0 0.0
  %426 = vmatprep.subr.mxu0 0.0
  %427 = vmatpush2.msra.mxu0 0.0
  %428 = vmatprep.subr.mxu0 0.0
  %429 = vmatpush2.msra.mxu0 0.0
  %430 = vmatprep.subr.mxu0 0.0
  %431 = vmatpush2.msra.mxu0 0.0
  %432 = vmatprep.subr.mxu0 0.0
  %433 = vmatpush2.msra.mxu0 0.0
  %434 = vmatprep.subr.mxu0 0.0
  %435 = vmatpush2.msra.mxu0 0.0
  %436 = vmatprep.subr.mxu0 0.0
  %437 = vmatpush2.msra.mxu0 0.0
  %438 = vmatprep.subr.mxu0 0.0
  %439 = vmatpush2.msra.mxu0 0.0
  %440 = vmatprep.subr.mxu0 0.0
  %441 = vmatpush2.msra.mxu0 0.0
  %442 = vmatprep.subr.mxu0 0.0
  %443 = vmatpush2.msra.mxu0 0.0
  %444 = vmatprep.subr.mxu0 0.0
  %445 = vmatpush2.msra.mxu0 0.0
  %446 = vmatprep.mubr.f32.mxu0 0.0
  %447 = vmatmul.mubr.f32.gmra.mxu0 %v349
  %v448 = vpop.f32.mrf.mxu0
  %v449 = vadd.f32 %v221, %v448
  %v450 = vpop.f32.mrf.mxu0
  %v451 = vadd.f32 %v225, %v450
  %452 = vdwg.mxu0
  %v453 = vxor.u32 %v449, 2147483648
  %v454 = vmul.f32 %v453, 1.442695
  %v455 = vpow.pop %v454
  %v456 = vadd.f32 %v455, 1.0
  %v457 = vrcp.pop %v456
  %v458 = vmul.f32 1.0, %v457
  %v459 = vtanh.pop %v451
  %v460 = vxor.u32 %v451, 2147483648
  %v461 = vmul.f32 %v460, 1.442695
  %v462 = vpow.pop %v461
  %v463 = vadd.f32 %v462, 1.0
  %v464 = vrcp.pop %v463
  %v465 = vmul.f32 1.0, %v464
  %v466 = vmul.f32 %v458, 0.0
  %v467 = vmul.f32 %v458, %v459
  %469 = vrot.lane.b32.xlu0 %v467, 64
  %v470 = vpop.permute.xlu0 %469
  %v472 = vadd.f32 %v466, %v470
  %v473 = vtanh.pop %v472
  %v474 = vmul.f32 %v465, %v473
  %vm475 = vcmp.eq.s32.totalorder %v228, 0
  %v476 = vsel %vm475, 1, 0
  %477 = vset.pattern.permute.xlu0 0
  %478 = vperm.xlu0 %477, %v476
  %v479 = vpop.permute.xlu0 %478
  %vm480 = vcmp.eq.s32.totalorder %v479, 1
  %v481 = vsel %vm480, %v474, 0.0
  %v482 = vld [vmem:[#allocation2 + $0x10] sm:$0xff]
  %v483 = vld [vmem:[#allocation2 + $0x18] sm:$0xff]
  %v484 = vsel %vm62, %v347, 0
  %486 = vmatprep.subr.mxu0 0.0
  %487 = vmatpush1.msra.mxu0 0.0
  %488 = vmatprep.subr.mxu0 0.0
  %489 = vmatpush1.msra.mxu0 0.0
  %490 = vmatprep.subr.mxu0 0.0
  %491 = vmatpush1.msra.mxu0 0.0
  %492 = vmatprep.subr.mxu0 0.0
  %493 = vmatpush1.msra.mxu0 0.0
  %494 = vmatprep.subr.mxu0 0.0
  %495 = vmatpush1.msra.mxu0 0.0
  %496 = vmatprep.subr.mxu0 0.0
  %497 = vmatpush1.msra.mxu0 0.0
  %498 = vmatprep.subr.mxu0 0.0
  %499 = vmatpush1.msra.mxu0 0.0
  %500 = vmatprep.subr.mxu0 0.0
  %501 = vmatpush1.msra.mxu0 0.0
  %502 = vmatprep.subr.mxu0 %v246
  %503 = vmatpush1.msra.mxu0 %v245
  %504 = vmatprep.subr.mxu0 %v244
  %505 = vmatpush1.msra.mxu0 %v243
  %506 = vmatprep.subr.mxu0 %v242
  %507 = vmatpush1.msra.mxu0 %v241
  %508 = vmatprep.subr.mxu0 %v240
  %509 = vmatpush1.msra.mxu0 %v239
  %510 = vmatprep.subr.mxu0 %v238
  %511 = vmatpush1.msra.mxu0 %v237
  %512 = vmatprep.subr.mxu0 %v236
  %513 = vmatpush1.msra.mxu0 %v235
  %514 = vmatprep.subr.mxu0 %v234
  %515 = vmatpush1.msra.mxu0 %v233
  %516 = vmatprep.subr.mxu0 %v232
  %517 = vmatpush1.msra.mxu0 %v231
  %518 = vmatprep.subr.mxu0 0.0
  %519 = vmatpush2.msra.mxu0 0.0
  %520 = vmatprep.subr.mxu0 0.0
  %521 = vmatpush2.msra.mxu0 0.0
  %522 = vmatprep.subr.mxu0 0.0
  %523 = vmatpush2.msra.mxu0 0.0
  %524 = vmatprep.subr.mxu0 0.0
  %525 = vmatpush2.msra.mxu0 0.0
  %526 = vmatprep.subr.mxu0 0.0
  %527 = vmatpush2.msra.mxu0 0.0
  %528 = vmatprep.subr.mxu0 0.0
  %529 = vmatpush2.msra.mxu0 0.0
  %530 = vmatprep.subr.mxu0 0.0
  %531 = vmatpush2.msra.mxu0 0.0
  %532 = vmatprep.subr.mxu0 0.0
  %533 = vmatpush2.msra.mxu0 0.0
  %534 = vmatprep.subr.mxu0 0.0
  %535 = vmatpush2.msra.mxu0 0.0
  %536 = vmatprep.subr.mxu0 0.0
  %537 = vmatpush2.msra.mxu0 0.0
  %538 = vmatprep.subr.mxu0 0.0
  %539 = vmatpush2.msra.mxu0 0.0
  %540 = vmatprep.subr.mxu0 0.0
  %541 = vmatpush2.msra.mxu0 0.0
  %542 = vmatprep.subr.mxu0 0.0
  %543 = vmatpush2.msra.mxu0 0.0
  %544 = vmatprep.subr.mxu0 0.0
  %545 = vmatpush2.msra.mxu0 0.0
  %546 = vmatprep.subr.mxu0 0.0
  %547 = vmatpush2.msra.mxu0 0.0
  %548 = vmatprep.subr.mxu0 0.0
  %549 = vmatpush2.msra.mxu0 0.0
  %550 = vmatprep.mubr.f32.mxu0 0.0
  %551 = vmatmul.mubr.f32.gmra.mxu0 %v484
  %v552 = vpop.f32.mrf.mxu0
  %v553 = vadd.f32 0.0, %v552
  %v554 = vpop.f32.mrf.mxu0
  %v555 = vadd.f32 0.0, %v554
  %556 = vdwg.mxu0
  %v557 = vadd.f32 %v482, %v553
  %v558 = vadd.f32 %v483, %v555
  %v559 = vxor.u32 %v557, 2147483648
  %v560 = vmul.f32 %v559, 1.442695
  %v561 = vpow.pop %v560
  %v562 = vadd.f32 %v561, 1.0
  %v563 = vrcp.pop %v562
  %v564 = vmul.f32 1.0, %v563
  %v565 = vtanh.pop %v558
  %v566 = vxor.u32 %v558, 2147483648
  %v567 = vmul.f32 %v566, 1.442695
  %v568 = vpow.pop %v567
  %v569 = vadd.f32 %v568, 1.0
  %v570 = vrcp.pop %v569
  %v571 = vmul.f32 1.0, %v570
  %v572 = vmul.f32 %v564, %v342
  %v573 = vmul.f32 %v564, %v565
  %575 = vrot.lane.b32.xlu0 %v573, 64
  %v576 = vpop.permute.xlu0 %575
  %v578 = vadd.f32 %v572, %v576
  %v579 = vtanh.pop %v578
  %v580 = vmul.f32 %v571, %v579
  %582 = vrot.lane.b32.xlu0 %v580, 64
  %v583 = vpop.permute.xlu0 %582
  %v585 = vsel %vm62, %v583, %v474
  %586 = vmatprep.subr.mxu0 %v381
  %587 = vmatpush1.msra.mxu0 %v380
  %588 = vmatprep.subr.mxu0 %v379
  %589 = vmatpush1.msra.mxu0 %v378
  %590 = vmatprep.subr.mxu0 %v377
  %591 = vmatpush1.msra.mxu0 %v376
  %592 = vmatprep.subr.mxu0 %v375
  %593 = vmatpush1.msra.mxu0 %v374
  %594 = vmatprep.subr.mxu0 %v373
  %595 = vmatpush1.msra.mxu0 %v372
  %596 = vmatprep.subr.mxu0 %v371
  %597 = vmatpush1.msra.mxu0 %v370
  %598 = vmatprep.subr.mxu0 %v369
  %599 = vmatpush1.msra.mxu0 %v368
  %600 = vmatprep.subr.mxu0 %v367
  %601 = vmatpush1.msra.mxu0 %v366
  %602 = vmatprep.subr.mxu0 %v365
  %603 = vmatpush1.msra.mxu0 %v364
  %604 = vmatprep.subr.mxu0 %v363
  %605 = vmatpush1.msra.mxu0 %v362
  %606 = vmatprep.subr.mxu0 %v361
  %607 = vmatpush1.msra.mxu0 %v360
  %608 = vmatprep.subr.mxu0 %v359
  %609 = vmatpush1.msra.mxu0 %v358
  %610 = vmatprep.subr.mxu0 %v357
  %611 = vmatpush1.msra.mxu0 %v356
  %612 = vmatprep.subr.mxu0 %v355
  %613 = vmatpush1.msra.mxu0 %v354
  %614 = vmatprep.subr.mxu0 %v353
  %615 = vmatpush1.msra.mxu0 %v352
  %616 = vmatprep.subr.mxu0 %v351
  %617 = vmatpush1.msra.mxu0 %v350
  %618 = vmatprep.subr.mxu0 0.0
  %619 = vmatpush2.msra.mxu0 0.0
  %620 = vmatprep.subr.mxu0 0.0
  %621 = vmatpush2.msra.mxu0 0.0
  %622 = vmatprep.subr.mxu0 0.0
  %623 = vmatpush2.msra.mxu0 0.0
  %624 = vmatprep.subr.mxu0 0.0
  %625 = vmatpush2.msra.mxu0 0.0
  %626 = vmatprep.subr.mxu0 0.0
  %627 = vmatpush2.msra.mxu0 0.0
  %628 = vmatprep.subr.mxu0 0.0
  %629 = vmatpush2.msra.mxu0 0.0
  %630 = vmatprep.subr.mxu0 0.0
  %631 = vmatpush2.msra.mxu0 0.0
  %632 = vmatprep.subr.mxu0 0.0
  %633 = vmatpush2.msra.mxu0 0.0
  %634 = vmatprep.subr.mxu0 0.0
  %635 = vmatpush2.msra.mxu0 0.0
  %636 = vmatprep.subr.mxu0 0.0
  %637 = vmatpush2.msra.mxu0 0.0
  %638 = vmatprep.subr.mxu0 0.0
  %639 = vmatpush2.msra.mxu0 0.0
  %640 = vmatprep.subr.mxu0 0.0
  %641 = vmatpush2.msra.mxu0 0.0
  %642 = vmatprep.subr.mxu0 0.0
  %643 = vmatpush2.msra.mxu0 0.0
  %644 = vmatprep.subr.mxu0 0.0
  %645 = vmatpush2.msra.mxu0 0.0
  %646 = vmatprep.subr.mxu0 0.0
  %647 = vmatpush2.msra.mxu0 0.0
  %648 = vmatprep.subr.mxu0 0.0
  %649 = vmatpush2.msra.mxu0 0.0
  %650 = vmatprep.mubr.f32.mxu0 0.0
  %651 = vmatmul.mubr.f32.gmra.mxu0 %v585
  %v652 = vpop.f32.mrf.mxu0
  %v653 = vadd.f32 %v221, %v652
  %v654 = vpop.f32.mrf.mxu0
  %v655 = vadd.f32 %v225, %v654
  %656 = vdwg.mxu0
  %v657 = vxor.u32 %v653, 2147483648
  %v658 = vmul.f32 %v657, 1.442695
  %v659 = vpow.pop %v658
  %v660 = vadd.f32 %v659, 1.0
  %v661 = vrcp.pop %v660
  %v662 = vmul.f32 1.0, %v661
  %v663 = vtanh.pop %v655
  %v664 = vxor.u32 %v655, 2147483648
  %v665 = vmul.f32 %v664, 1.442695
  %v666 = vpow.pop %v665
  %v667 = vadd.f32 %v666, 1.0
  %v668 = vrcp.pop %v667
  %v669 = vmul.f32 1.0, %v668
  %v670 = vmul.f32 %v662, %v472
  %v671 = vmul.f32 %v662, %v663
  %673 = vrot.lane.b32.xlu0 %v671, 64
  %v674 = vpop.permute.xlu0 %673
  %v676 = vadd.f32 %v670, %v674
  %v677 = vtanh.pop %v676
  %v678 = vmul.f32 %v669, %v677
  %vm679 = vcmp.eq.s32.totalorder %v228, 1
  %v680 = vsel %vm679, 1, 0
  %681 = vset.pattern.permute.xlu0 0
  %682 = vperm.xlu0 %681, %v680
  %v683 = vpop.permute.xlu0 %682
  %vm684 = vcmp.eq.s32.totalorder %v683, 1
  %v685 = vsel %vm684, %v678, %v481
  %v686 = vld [vmem:[#allocation2 + $0x20] sm:$0xff]
  %v687 = vld [vmem:[#allocation2 + $0x28] sm:$0xff]
  %v688 = vsel %vm62, %v583, 0
  %690 = vmatprep.subr.mxu0 0.0
  %691 = vmatpush1.msra.mxu0 0.0
  %692 = vmatprep.subr.mxu0 0.0
  %693 = vmatpush1.msra.mxu0 0.0
  %694 = vmatprep.subr.mxu0 0.0
  %695 = vmatpush1.msra.mxu0 0.0
  %696 = vmatprep.subr.mxu0 0.0
  %697 = vmatpush1.msra.mxu0 0.0
  %698 = vmatprep.subr.mxu0 0.0
  %699 = vmatpush1.msra.mxu0 0.0
  %700 = vmatprep.subr.mxu0 0.0
  %701 = vmatpush1.msra.mxu0 0.0
  %702 = vmatprep.subr.mxu0 0.0
  %703 = vmatpush1.msra.mxu0 0.0
  %704 = vmatprep.subr.mxu0 0.0
  %705 = vmatpush1.msra.mxu0 0.0
  %706 = vmatprep.subr.mxu0 %v246
  %707 = vmatpush1.msra.mxu0 %v245
  %708 = vmatprep.subr.mxu0 %v244
  %709 = vmatpush1.msra.mxu0 %v243
  %710 = vmatprep.subr.mxu0 %v242
  %711 = vmatpush1.msra.mxu0 %v241
  %712 = vmatprep.subr.mxu0 %v240
  %713 = vmatpush1.msra.mxu0 %v239
  %714 = vmatprep.subr.mxu0 %v238
  %715 = vmatpush1.msra.mxu0 %v237
  %716 = vmatprep.subr.mxu0 %v236
  %717 = vmatpush1.msra.mxu0 %v235
  %718 = vmatprep.subr.mxu0 %v234
  %719 = vmatpush1.msra.mxu0 %v233
  %720 = vmatprep.subr.mxu0 %v232
  %721 = vmatpush1.msra.mxu0 %v231
  %722 = vmatprep.subr.mxu0 0.0
  %723 = vmatpush2.msra.mxu0 0.0
  %724 = vmatprep.subr.mxu0 0.0
  %725 = vmatpush2.msra.mxu0 0.0
  %726 = vmatprep.subr.mxu0 0.0
  %727 = vmatpush2.msra.mxu0 0.0
  %728 = vmatprep.subr.mxu0 0.0
  %729 = vmatpush2.msra.mxu0 0.0
  %730 = vmatprep.subr.mxu0 0.0
  %731 = vmatpush2.msra.mxu0 0.0
  %732 = vmatprep.subr.mxu0 0.0
  %733 = vmatpush2.msra.mxu0 0.0
  %734 = vmatprep.subr.mxu0 0.0
  %735 = vmatpush2.msra.mxu0 0.0
  %736 = vmatprep.subr.mxu0 0.0
  %737 = vmatpush2.msra.mxu0 0.0
  %738 = vmatprep.subr.mxu0 0.0
  %739 = vmatpush2.msra.mxu0 0.0
  %740 = vmatprep.subr.mxu0 0.0
  %741 = vmatpush2.msra.mxu0 0.0
  %742 = vmatprep.subr.mxu0 0.0
  %743 = vmatpush2.msra.mxu0 0.0
  %744 = vmatprep.subr.mxu0 0.0
  %745 = vmatpush2.msra.mxu0 0.0
  %746 = vmatprep.subr.mxu0 0.0
  %747 = vmatpush2.msra.mxu0 0.0
  %748 = vmatprep.subr.mxu0 0.0
  %749 = vmatpush2.msra.mxu0 0.0
  %750 = vmatprep.subr.mxu0 0.0
  %751 = vmatpush2.msra.mxu0 0.0
  %752 = vmatprep.subr.mxu0 0.0
  %753 = vmatpush2.msra.mxu0 0.0
  %754 = vmatprep.mubr.f32.mxu0 0.0
  %755 = vmatmul.mubr.f32.gmra.mxu0 %v688
  %v756 = vpop.f32.mrf.mxu0
  %v757 = vadd.f32 0.0, %v756
  %v758 = vpop.f32.mrf.mxu0
  %v759 = vadd.f32 0.0, %v758
  %760 = vdwg.mxu0
  %v761 = vadd.f32 %v686, %v757
  %v762 = vadd.f32 %v687, %v759
  %v763 = vxor.u32 %v761, 2147483648
  %v764 = vmul.f32 %v763, 1.442695
  %v765 = vpow.pop %v764
  %v766 = vadd.f32 %v765, 1.0
  %v767 = vrcp.pop %v766
  %v768 = vmul.f32 1.0, %v767
  %v769 = vtanh.pop %v762
  %v770 = vxor.u32 %v762, 2147483648
  %v771 = vmul.f32 %v770, 1.442695
  %v772 = vpow.pop %v771
  %v773 = vadd.f32 %v772, 1.0
  %v774 = vrcp.pop %v773
  %v775 = vmul.f32 1.0, %v774
  %v776 = vmul.f32 %v768, %v578
  %v777 = vmul.f32 %v768, %v769
  %779 = vrot.lane.b32.xlu0 %v777, 64
  %v780 = vpop.permute.xlu0 %779
  %v782 = vadd.f32 %v776, %v780
  %v783 = vtanh.pop %v782
  %v784 = vmul.f32 %v775, %v783
  %786 = vrot.lane.b32.xlu0 %v784, 64
  %v787 = vpop.permute.xlu0 %786
  %v789 = vsel %vm62, %v787, %v678
  %790 = vmatprep.subr.mxu0 %v381
  %791 = vmatpush1.msra.mxu0 %v380
  %792 = vmatprep.subr.mxu0 %v379
  %793 = vmatpush1.msra.mxu0 %v378
  %794 = vmatprep.subr.mxu0 %v377
  %795 = vmatpush1.msra.mxu0 %v376
  %796 = vmatprep.subr.mxu0 %v375
  %797 = vmatpush1.msra.mxu0 %v374
  %798 = vmatprep.subr.mxu0 %v373
  %799 = vmatpush1.msra.mxu0 %v372
  %800 = vmatprep.subr.mxu0 %v371
  %801 = vmatpush1.msra.mxu0 %v370
  %802 = vmatprep.subr.mxu0 %v369
  %803 = vmatpush1.msra.mxu0 %v368
  %804 = vmatprep.subr.mxu0 %v367
  %805 = vmatpush1.msra.mxu0 %v366
  %806 = vmatprep.subr.mxu0 %v365
  %807 = vmatpush1.msra.mxu0 %v364
  %808 = vmatprep.subr.mxu0 %v363
  %809 = vmatpush1.msra.mxu0 %v362
  %810 = vmatprep.subr.mxu0 %v361
  %811 = vmatpush1.msra.mxu0 %v360
  %812 = vmatprep.subr.mxu0 %v359
  %813 = vmatpush1.msra.mxu0 %v358
  %814 = vmatprep.subr.mxu0 %v357
  %815 = vmatpush1.msra.mxu0 %v356
  %816 = vmatprep.subr.mxu0 %v355
  %817 = vmatpush1.msra.mxu0 %v354
  %818 = vmatprep.subr.mxu0 %v353
  %819 = vmatpush1.msra.mxu0 %v352
  %820 = vmatprep.subr.mxu0 %v351
  %821 = vmatpush1.msra.mxu0 %v350
  %822 = vmatprep.subr.mxu0 0.0
  %823 = vmatpush2.msra.mxu0 0.0
  %824 = vmatprep.subr.mxu0 0.0
  %825 = vmatpush2.msra.mxu0 0.0
  %826 = vmatprep.subr.mxu0 0.0
  %827 = vmatpush2.msra.mxu0 0.0
  %828 = vmatprep.subr.mxu0 0.0
  %829 = vmatpush2.msra.mxu0 0.0
  %830 = vmatprep.subr.mxu0 0.0
  %831 = vmatpush2.msra.mxu0 0.0
  %832 = vmatprep.subr.mxu0 0.0
  %833 = vmatpush2.msra.mxu0 0.0
  %834 = vmatprep.subr.mxu0 0.0
  %835 = vmatpush2.msra.mxu0 0.0
  %836 = vmatprep.subr.mxu0 0.0
  %837 = vmatpush2.msra.mxu0 0.0
  %838 = vmatprep.subr.mxu0 0.0
  %839 = vmatpush2.msra.mxu0 0.0
  %840 = vmatprep.subr.mxu0 0.0
  %841 = vmatpush2.msra.mxu0 0.0
  %842 = vmatprep.subr.mxu0 0.0
  %843 = vmatpush2.msra.mxu0 0.0
  %844 = vmatprep.subr.mxu0 0.0
  %845 = vmatpush2.msra.mxu0 0.0
  %846 = vmatprep.subr.mxu0 0.0
  %847 = vmatpush2.msra.mxu0 0.0
  %848 = vmatprep.subr.mxu0 0.0
  %849 = vmatpush2.msra.mxu0 0.0
  %850 = vmatprep.subr.mxu0 0.0
  %851 = vmatpush2.msra.mxu0 0.0
  %852 = vmatprep.subr.mxu0 0.0
  %853 = vmatpush2.msra.mxu0 0.0
  %854 = vmatprep.mubr.f32.mxu0 0.0
  %855 = vmatmul.mubr.f32.gmra.mxu0 %v789
  %v856 = vpop.f32.mrf.mxu0
  %v857 = vadd.f32 %v221, %v856
  %v858 = vpop.f32.mrf.mxu0
  %v859 = vadd.f32 %v225, %v858
  %860 = vdwg.mxu0
  %v861 = vxor.u32 %v857, 2147483648
  %v862 = vmul.f32 %v861, 1.442695
  %v863 = vpow.pop %v862
  %v864 = vadd.f32 %v863, 1.0
  %v865 = vrcp.pop %v864
  %v866 = vmul.f32 1.0, %v865
  %v867 = vtanh.pop %v859
  %v868 = vxor.u32 %v859, 2147483648
  %v869 = vmul.f32 %v868, 1.442695
  %v870 = vpow.pop %v869
  %v871 = vadd.f32 %v870, 1.0
  %v872 = vrcp.pop %v871
  %v873 = vmul.f32 1.0, %v872
  %v874 = vmul.f32 %v866, %v676
  %v875 = vmul.f32 %v866, %v867
  %877 = vrot.lane.b32.xlu0 %v875, 64
  %v878 = vpop.permute.xlu0 %877
  %v880 = vadd.f32 %v874, %v878
  %v881 = vtanh.pop %v880
  %v882 = vmul.f32 %v873, %v881
  %vm883 = vcmp.eq.s32.totalorder %v228, 2
  %v884 = vsel %vm883, 1, 0
  %885 = vset.pattern.permute.xlu0 0
  %886 = vperm.xlu0 %885, %v884
  %v887 = vpop.permute.xlu0 %886
  %vm888 = vcmp.eq.s32.totalorder %v887, 1
  %v889 = vsel %vm888, %v882, %v685
  %v890 = vld [vmem:[#allocation2 + $0x30] sm:$0xff]
  %v891 = vld [vmem:[#allocation2 + $0x38] sm:$0xff]
  %v892 = vsel %vm62, %v787, 0
  %894 = vmatprep.subr.mxu0 0.0
  %895 = vmatpush1.msra.mxu0 0.0
  %896 = vmatprep.subr.mxu0 0.0
  %897 = vmatpush1.msra.mxu0 0.0
  %898 = vmatprep.subr.mxu0 0.0
  %899 = vmatpush1.msra.mxu0 0.0
  %900 = vmatprep.subr.mxu0 0.0
  %901 = vmatpush1.msra.mxu0 0.0
  %902 = vmatprep.subr.mxu0 0.0
  %903 = vmatpush1.msra.mxu0 0.0
  %904 = vmatprep.subr.mxu0 0.0
  %905 = vmatpush1.msra.mxu0 0.0
  %906 = vmatprep.subr.mxu0 0.0
  %907 = vmatpush1.msra.mxu0 0.0
  %908 = vmatprep.subr.mxu0 0.0
  %909 = vmatpush1.msra.mxu0 0.0
  %910 = vmatprep.subr.mxu0 %v246
  %911 = vmatpush1.msra.mxu0 %v245
  %912 = vmatprep.subr.mxu0 %v244
  %913 = vmatpush1.msra.mxu0 %v243
  %914 = vmatprep.subr.mxu0 %v242
  %915 = vmatpush1.msra.mxu0 %v241
  %916 = vmatprep.subr.mxu0 %v240
  %917 = vmatpush1.msra.mxu0 %v239
  %918 = vmatprep.subr.mxu0 %v238
  %919 = vmatpush1.msra.mxu0 %v237
  %920 = vmatprep.subr.mxu0 %v236
  %921 = vmatpush1.msra.mxu0 %v235
  %922 = vmatprep.subr.mxu0 %v234
  %923 = vmatpush1.msra.mxu0 %v233
  %924 = vmatprep.subr.mxu0 %v232
  %925 = vmatpush1.msra.mxu0 %v231
  %926 = vmatprep.subr.mxu0 0.0
  %927 = vmatpush2.msra.mxu0 0.0
  %928 = vmatprep.subr.mxu0 0.0
  %929 = vmatpush2.msra.mxu0 0.0
  %930 = vmatprep.subr.mxu0 0.0
  %931 = vmatpush2.msra.mxu0 0.0
  %932 = vmatprep.subr.mxu0 0.0
  %933 = vmatpush2.msra.mxu0 0.0
  %934 = vmatprep.subr.mxu0 0.0
  %935 = vmatpush2.msra.mxu0 0.0
  %936 = vmatprep.subr.mxu0 0.0
  %937 = vmatpush2.msra.mxu0 0.0
  %938 = vmatprep.subr.mxu0 0.0
  %939 = vmatpush2.msra.mxu0 0.0
  %940 = vmatprep.subr.mxu0 0.0
  %941 = vmatpush2.msra.mxu0 0.0
  %942 = vmatprep.subr.mxu0 0.0
  %943 = vmatpush2.msra.mxu0 0.0
  %944 = vmatprep.subr.mxu0 0.0
  %945 = vmatpush2.msra.mxu0 0.0
  %946 = vmatprep.subr.mxu0 0.0
  %947 = vmatpush2.msra.mxu0 0.0
  %948 = vmatprep.subr.mxu0 0.0
  %949 = vmatpush2.msra.mxu0 0.0
  %950 = vmatprep.subr.mxu0 0.0
  %951 = vmatpush2.msra.mxu0 0.0
  %952 = vmatprep.subr.mxu0 0.0
  %953 = vmatpush2.msra.mxu0 0.0
  %954 = vmatprep.subr.mxu0 0.0
  %955 = vmatpush2.msra.mxu0 0.0
  %956 = vmatprep.subr.mxu0 0.0
  %957 = vmatpush2.msra.mxu0 0.0
  %958 = vmatprep.mubr.f32.mxu0 0.0
  %959 = vmatmul.mubr.f32.gmra.mxu0 %v892
  %v960 = vpop.f32.mrf.mxu0
  %v961 = vadd.f32 0.0, %v960
  %v962 = vpop.f32.mrf.mxu0
  %v963 = vadd.f32 0.0, %v962
  %964 = vdwg.mxu0
  %v965 = vadd.f32 %v890, %v961
  %v966 = vadd.f32 %v891, %v963
  %v967 = vxor.u32 %v965, 2147483648
  %v968 = vmul.f32 %v967, 1.442695
  %v969 = vpow.pop %v968
  %v970 = vadd.f32 %v969, 1.0
  %v971 = vrcp.pop %v970
  %v972 = vmul.f32 1.0, %v971
  %v973 = vtanh.pop %v966
  %v974 = vxor.u32 %v966, 2147483648
  %v975 = vmul.f32 %v974, 1.442695
  %v976 = vpow.pop %v975
  %v977 = vadd.f32 %v976, 1.0
  %v978 = vrcp.pop %v977
  %v979 = vmul.f32 1.0, %v978
  %v980 = vmul.f32 %v972, %v782
  %v981 = vmul.f32 %v972, %v973
  %983 = vrot.lane.b32.xlu0 %v981, 64
  %v984 = vpop.permute.xlu0 %983
  %v986 = vadd.f32 %v980, %v984
  %v987 = vtanh.pop %v986
  %v988 = vmul.f32 %v979, %v987
  %990 = vrot.lane.b32.xlu0 %v988, 64
  %v991 = vpop.permute.xlu0 %990
  %v993 = vsel %vm62, %v991, %v882
  %994 = vmatprep.subr.mxu0 %v381
  %995 = vmatpush1.msra.mxu0 %v380
  %996 = vmatprep.subr.mxu0 %v379
  %997 = vmatpush1.msra.mxu0 %v378
  %998 = vmatprep.subr.mxu0 %v377
  %999 = vmatpush1.msra.mxu0 %v376
  %1000 = vmatprep.subr.mxu0 %v375
  %1001 = vmatpush1.msra.mxu0 %v374
  %1002 = vmatprep.subr.mxu0 %v373
  %1003 = vmatpush1.msra.mxu0 %v372
  %1004 = vmatprep.subr.mxu0 %v371
  %1005 = vmatpush1.msra.mxu0 %v370
  %1006 = vmatprep.subr.mxu0 %v369
  %1007 = vmatpush1.msra.mxu0 %v368
  %1008 = vmatprep.subr.mxu0 %v367
  %1009 = vmatpush1.msra.mxu0 %v366
  %1010 = vmatprep.subr.mxu0 %v365
  %1011 = vmatpush1.msra.mxu0 %v364
  %1012 = vmatprep.subr.mxu0 %v363
  %1013 = vmatpush1.msra.mxu0 %v362
  %1014 = vmatprep.subr.mxu0 %v361
  %1015 = vmatpush1.msra.mxu0 %v360
  %1016 = vmatprep.subr.mxu0 %v359
  %1017 = vmatpush1.msra.mxu0 %v358
  %1018 = vmatprep.subr.mxu0 %v357
  %1019 = vmatpush1.msra.mxu0 %v356
  %1020 = vmatprep.subr.mxu0 %v355
  %1021 = vmatpush1.msra.mxu0 %v354
  %1022 = vmatprep.subr.mxu0 %v353
  %1023 = vmatpush1.msra.mxu0 %v352
  %1024 = vmatprep.subr.mxu0 %v351
  %1025 = vmatpush1.msra.mxu0 %v350
  %1026 = vmatprep.subr.mxu0 0.0
  %1027 = vmatpush2.msra.mxu0 0.0
  %1028 = vmatprep.subr.mxu0 0.0
  %1029 = vmatpush2.msra.mxu0 0.0
  %1030 = vmatprep.subr.mxu0 0.0
  %1031 = vmatpush2.msra.mxu0 0.0
  %1032 = vmatprep.subr.mxu0 0.0
  %1033 = vmatpush2.msra.mxu0 0.0
  %1034 = vmatprep.subr.mxu0 0.0
  %1035 = vmatpush2.msra.mxu0 0.0
  %1036 = vmatprep.subr.mxu0 0.0
  %1037 = vmatpush2.msra.mxu0 0.0
  %1038 = vmatprep.subr.mxu0 0.0
  %1039 = vmatpush2.msra.mxu0 0.0
  %1040 = vmatprep.subr.mxu0 0.0
  %1041 = vmatpush2.msra.mxu0 0.0
  %1042 = vmatprep.subr.mxu0 0.0
  %1043 = vmatpush2.msra.mxu0 0.0
  %1044 = vmatprep.subr.mxu0 0.0
  %1045 = vmatpush2.msra.mxu0 0.0
  %1046 = vmatprep.subr.mxu0 0.0
  %1047 = vmatpush2.msra.mxu0 0.0
  %1048 = vmatprep.subr.mxu0 0.0
  %1049 = vmatpush2.msra.mxu0 0.0
  %1050 = vmatprep.subr.mxu0 0.0
  %1051 = vmatpush2.msra.mxu0 0.0
  %1052 = vmatprep.subr.mxu0 0.0
  %1053 = vmatpush2.msra.mxu0 0.0
  %1054 = vmatprep.subr.mxu0 0.0
  %1055 = vmatpush2.msra.mxu0 0.0
  %1056 = vmatprep.subr.mxu0 0.0
  %1057 = vmatpush2.msra.mxu0 0.0
  %1058 = vmatprep.mubr.f32.mxu0 0.0
  %1059 = vmatmul.mubr.f32.gmra.mxu0 %v993
  %v1060 = vpop.f32.mrf.mxu0
  %v1061 = vadd.f32 %v221, %v1060
  %v1062 = vpop.f32.mrf.mxu0
  %v1063 = vadd.f32 %v225, %v1062
  %1064 = vdwg.mxu0
  %v1065 = vxor.u32 %v1061, 2147483648
  %v1066 = vmul.f32 %v1065, 1.442695
  %v1067 = vpow.pop %v1066
  %v1068 = vadd.f32 %v1067, 1.0
  %v1069 = vrcp.pop %v1068
  %v1070 = vmul.f32 1.0, %v1069
  %v1071 = vtanh.pop %v1063
  %v1072 = vxor.u32 %v1063, 2147483648
  %v1073 = vmul.f32 %v1072, 1.442695
  %v1074 = vpow.pop %v1073
  %v1075 = vadd.f32 %v1074, 1.0
  %v1076 = vrcp.pop %v1075
  %v1077 = vmul.f32 1.0, %v1076
  %v1078 = vmul.f32 %v1070, %v880
  %v1079 = vmul.f32 %v1070, %v1071
  %1081 = vrot.lane.b32.xlu0 %v1079, 64
  %v1082 = vpop.permute.xlu0 %1081
  %v1084 = vadd.f32 %v1078, %v1082
  %v1085 = vtanh.pop %v1084
  %v1086 = vmul.f32 %v1077, %v1085
  %vm1087 = vcmp.eq.s32.totalorder %v228, 3
  %v1088 = vsel %vm1087, 1, 0
  %1089 = vset.pattern.permute.xlu0 0
  %1090 = vperm.xlu0 %1089, %v1088
  %v1091 = vpop.permute.xlu0 %1090
  %vm1092 = vcmp.eq.s32.totalorder %v1091, 1
  %v1093 = vsel %vm1092, %v1086, %v889
  %v1094 = vld [vmem:[#allocation2 + $0x40] sm:$0xff]
  %v1095 = vld [vmem:[#allocation2 + $0x48] sm:$0xff]
  %v1096 = vsel %vm62, %v991, 0
  %1098 = vmatprep.subr.mxu0 0.0
  %1099 = vmatpush1.msra.mxu0 0.0
  %1100 = vmatprep.subr.mxu0 0.0
  %1101 = vmatpush1.msra.mxu0 0.0
  %1102 = vmatprep.subr.mxu0 0.0
  %1103 = vmatpush1.msra.mxu0 0.0
  %1104 = vmatprep.subr.mxu0 0.0
  %1105 = vmatpush1.msra.mxu0 0.0
  %1106 = vmatprep.subr.mxu0 0.0
  %1107 = vmatpush1.msra.mxu0 0.0
  %1108 = vmatprep.subr.mxu0 0.0
  %1109 = vmatpush1.msra.mxu0 0.0
  %1110 = vmatprep.subr.mxu0 0.0
  %1111 = vmatpush1.msra.mxu0 0.0
  %1112 = vmatprep.subr.mxu0 0.0
  %1113 = vmatpush1.msra.mxu0 0.0
  %1114 = vmatprep.subr.mxu0 %v246
  %1115 = vmatpush1.msra.mxu0 %v245
  %1116 = vmatprep.subr.mxu0 %v244
  %1117 = vmatpush1.msra.mxu0 %v243
  %1118 = vmatprep.subr.mxu0 %v242
  %1119 = vmatpush1.msra.mxu0 %v241
  %1120 = vmatprep.subr.mxu0 %v240
  %1121 = vmatpush1.msra.mxu0 %v239
  %1122 = vmatprep.subr.mxu0 %v238
  %1123 = vmatpush1.msra.mxu0 %v237
  %1124 = vmatprep.subr.mxu0 %v236
  %1125 = vmatpush1.msra.mxu0 %v235
  %1126 = vmatprep.subr.mxu0 %v234
  %1127 = vmatpush1.msra.mxu0 %v233
  %1128 = vmatprep.subr.mxu0 %v232
  %1129 = vmatpush1.msra.mxu0 %v231
  %1130 = vmatprep.subr.mxu0 0.0
  %1131 = vmatpush2.msra.mxu0 0.0
  %1132 = vmatprep.subr.mxu0 0.0
  %1133 = vmatpush2.msra.mxu0 0.0
  %1134 = vmatprep.subr.mxu0 0.0
  %1135 = vmatpush2.msra.mxu0 0.0
  %1136 = vmatprep.subr.mxu0 0.0
  %1137 = vmatpush2.msra.mxu0 0.0
  %1138 = vmatprep.subr.mxu0 0.0
  %1139 = vmatpush2.msra.mxu0 0.0
  %1140 = vmatprep.subr.mxu0 0.0
  %1141 = vmatpush2.msra.mxu0 0.0
  %1142 = vmatprep.subr.mxu0 0.0
  %1143 = vmatpush2.msra.mxu0 0.0
  %1144 = vmatprep.subr.mxu0 0.0
  %1145 = vmatpush2.msra.mxu0 0.0
  %1146 = vmatprep.subr.mxu0 0.0
  %1147 = vmatpush2.msra.mxu0 0.0
  %1148 = vmatprep.subr.mxu0 0.0
  %1149 = vmatpush2.msra.mxu0 0.0
  %1150 = vmatprep.subr.mxu0 0.0
  %1151 = vmatpush2.msra.mxu0 0.0
  %1152 = vmatprep.subr.mxu0 0.0
  %1153 = vmatpush2.msra.mxu0 0.0
  %1154 = vmatprep.subr.mxu0 0.0
  %1155 = vmatpush2.msra.mxu0 0.0
  %1156 = vmatprep.subr.mxu0 0.0
  %1157 = vmatpush2.msra.mxu0 0.0
  %1158 = vmatprep.subr.mxu0 0.0
  %1159 = vmatpush2.msra.mxu0 0.0
  %1160 = vmatprep.subr.mxu0 0.0
  %1161 = vmatpush2.msra.mxu0 0.0
  %1162 = vmatprep.mubr.f32.mxu0 0.0
  %1163 = vmatmul.mubr.f32.gmra.mxu0 %v1096
  %v1164 = vpop.f32.mrf.mxu0
  %v1165 = vadd.f32 0.0, %v1164
  %v1166 = vpop.f32.mrf.mxu0
  %v1167 = vadd.f32 0.0, %v1166
  %1168 = vdwg.mxu0
  %v1169 = vadd.f32 %v1094, %v1165
  %v1170 = vadd.f32 %v1095, %v1167
  %v1171 = vxor.u32 %v1169, 2147483648
  %v1172 = vmul.f32 %v1171, 1.442695
  %v1173 = vpow.pop %v1172
  %v1174 = vadd.f32 %v1173, 1.0
  %v1175 = vrcp.pop %v1174
  %v1176 = vmul.f32 1.0, %v1175
  %v1177 = vtanh.pop %v1170
  %v1178 = vxor.u32 %v1170, 2147483648
  %v1179 = vmul.f32 %v1178, 1.442695
  %v1180 = vpow.pop %v1179
  %v1181 = vadd.f32 %v1180, 1.0
  %v1182 = vrcp.pop %v1181
  %v1183 = vmul.f32 1.0, %v1182
  %v1184 = vmul.f32 %v1176, %v986
  %v1185 = vmul.f32 %v1176, %v1177
  %1187 = vrot.lane.b32.xlu0 %v1185, 64
  %v1188 = vpop.permute.xlu0 %1187
  %v1190 = vadd.f32 %v1184, %v1188
  %v1191 = vtanh.pop %v1190
  %v1192 = vmul.f32 %v1183, %v1191
  %1194 = vrot.lane.b32.xlu0 %v1192, 64
  %v1195 = vpop.permute.xlu0 %1194
  %v1197 = vsel %vm62, %v1195, %v1086
  %1198 = vmatprep.subr.mxu0 %v381
  %1199 = vmatpush1.msra.mxu0 %v380
  %1200 = vmatprep.subr.mxu0 %v379
  %1201 = vmatpush1.msra.mxu0 %v378
  %1202 = vmatprep.subr.mxu0 %v377
  %1203 = vmatpush1.msra.mxu0 %v376
  %1204 = vmatprep.subr.mxu0 %v375
  %1205 = vmatpush1.msra.mxu0 %v374
  %1206 = vmatprep.subr.mxu0 %v373
  %1207 = vmatpush1.msra.mxu0 %v372
  %1208 = vmatprep.subr.mxu0 %v371
  %1209 = vmatpush1.msra.mxu0 %v370
  %1210 = vmatprep.subr.mxu0 %v369
  %1211 = vmatpush1.msra.mxu0 %v368
  %1212 = vmatprep.subr.mxu0 %v367
  %1213 = vmatpush1.msra.mxu0 %v366
  %1214 = vmatprep.subr.mxu0 %v365
  %1215 = vmatpush1.msra.mxu0 %v364
  %1216 = vmatprep.subr.mxu0 %v363
  %1217 = vmatpush1.msra.mxu0 %v362
  %1218 = vmatprep.subr.mxu0 %v361
  %1219 = vmatpush1.msra.mxu0 %v360
  %1220 = vmatprep.subr.mxu0 %v359
  %1221 = vmatpush1.msra.mxu0 %v358
  %1222 = vmatprep.subr.mxu0 %v357
  %1223 = vmatpush1.msra.mxu0 %v356
  %1224 = vmatprep.subr.mxu0 %v355
  %1225 = vmatpush1.msra.mxu0 %v354
  %1226 = vmatprep.subr.mxu0 %v353
  %1227 = vmatpush1.msra.mxu0 %v352
  %1228 = vmatprep.subr.mxu0 %v351
  %1229 = vmatpush1.msra.mxu0 %v350
  %1230 = vmatprep.subr.mxu0 0.0
  %1231 = vmatpush2.msra.mxu0 0.0
  %1232 = vmatprep.subr.mxu0 0.0
  %1233 = vmatpush2.msra.mxu0 0.0
  %1234 = vmatprep.subr.mxu0 0.0
  %1235 = vmatpush2.msra.mxu0 0.0
  %1236 = vmatprep.subr.mxu0 0.0
  %1237 = vmatpush2.msra.mxu0 0.0
  %1238 = vmatprep.subr.mxu0 0.0
  %1239 = vmatpush2.msra.mxu0 0.0
  %1240 = vmatprep.subr.mxu0 0.0
  %1241 = vmatpush2.msra.mxu0 0.0
  %1242 = vmatprep.subr.mxu0 0.0
  %1243 = vmatpush2.msra.mxu0 0.0
  %1244 = vmatprep.subr.mxu0 0.0
  %1245 = vmatpush2.msra.mxu0 0.0
  %1246 = vmatprep.subr.mxu0 0.0
  %1247 = vmatpush2.msra.mxu0 0.0
  %1248 = vmatprep.subr.mxu0 0.0
  %1249 = vmatpush2.msra.mxu0 0.0
  %1250 = vmatprep.subr.mxu0 0.0
  %1251 = vmatpush2.msra.mxu0 0.0
  %1252 = vmatprep.subr.mxu0 0.0
  %1253 = vmatpush2.msra.mxu0 0.0
  %1254 = vmatprep.subr.mxu0 0.0
  %1255 = vmatpush2.msra.mxu0 0.0
  %1256 = vmatprep.subr.mxu0 0.0
  %1257 = vmatpush2.msra.mxu0 0.0
  %1258 = vmatprep.subr.mxu0 0.0
  %1259 = vmatpush2.msra.mxu0 0.0
  %1260 = vmatprep.subr.mxu0 0.0
  %1261 = vmatpush2.msra.mxu0 0.0
  %1262 = vmatprep.mubr.f32.mxu0 0.0
  %1263 = vmatmul.mubr.f32.gmra.mxu0 %v1197
  %v1264 = vpop.f32.mrf.mxu0
  %v1265 = vadd.f32 %v221, %v1264
  %v1266 = vpop.f32.mrf.mxu0
  %v1267 = vadd.f32 %v225, %v1266
  %1268 = vdwg.mxu0
  %v1269 = vxor.u32 %v1265, 2147483648
  %v1270 = vmul.f32 %v1269, 1.442695
  %v1271 = vpow.pop %v1270
  %v1272 = vadd.f32 %v1271, 1.0
  %v1273 = vrcp.pop %v1272
  %v1274 = vmul.f32 1.0, %v1273
  %v1275 = vtanh.pop %v1267
  %v1276 = vxor.u32 %v1267, 2147483648
  %v1277 = vmul.f32 %v1276, 1.442695
  %v1278 = vpow.pop %v1277
  %v1279 = vadd.f32 %v1278, 1.0
  %v1280 = vrcp.pop %v1279
  %v1281 = vmul.f32 1.0, %v1280
  %v1282 = vmul.f32 %v1274, %v1084
  %v1283 = vmul.f32 %v1274, %v1275
  %1285 = vrot.lane.b32.xlu0 %v1283, 64
  %v1286 = vpop.permute.xlu0 %1285
  %v1288 = vadd.f32 %v1282, %v1286
  %v1289 = vtanh.pop %v1288
  %v1290 = vmul.f32 %v1281, %v1289
  %vm1291 = vcmp.eq.s32.totalorder %v228, 4
  %v1292 = vsel %vm1291, 1, 0
  %1293 = vset.pattern.permute.xlu0 0
  %1294 = vperm.xlu0 %1293, %v1292
  %v1295 = vpop.permute.xlu0 %1294
  %vm1296 = vcmp.eq.s32.totalorder %v1295, 1
  %v1297 = vsel %vm1296, %v1290, %v1093
  %v1298 = vld [vmem:[#allocation2 + $0x50] sm:$0xff]
  %v1299 = vld [vmem:[#allocation2 + $0x58] sm:$0xff]
  %v1300 = vsel %vm62, %v1195, 0
  %1302 = vmatprep.subr.mxu0 0.0
  %1303 = vmatpush1.msra.mxu0 0.0
  %1304 = vmatprep.subr.mxu0 0.0
  %1305 = vmatpush1.msra.mxu0 0.0
  %1306 = vmatprep.subr.mxu0 0.0
  %1307 = vmatpush1.msra.mxu0 0.0
  %1308 = vmatprep.subr.mxu0 0.0
  %1309 = vmatpush1.msra.mxu0 0.0
  %1310 = vmatprep.subr.mxu0 0.0
  %1311 = vmatpush1.msra.mxu0 0.0
  %1312 = vmatprep.subr.mxu0 0.0
  %1313 = vmatpush1.msra.mxu0 0.0
  %1314 = vmatprep.subr.mxu0 0.0
  %1315 = vmatpush1.msra.mxu0 0.0
  %1316 = vmatprep.subr.mxu0 0.0
  %1317 = vmatpush1.msra.mxu0 0.0
  %1318 = vmatprep.subr.mxu0 %v246
  %1319 = vmatpush1.msra.mxu0 %v245
  %1320 = vmatprep.subr.mxu0 %v244
  %1321 = vmatpush1.msra.mxu0 %v243
  %1322 = vmatprep.subr.mxu0 %v242
  %1323 = vmatpush1.msra.mxu0 %v241
  %1324 = vmatprep.subr.mxu0 %v240
  %1325 = vmatpush1.msra.mxu0 %v239
  %1326 = vmatprep.subr.mxu0 %v238
  %1327 = vmatpush1.msra.mxu0 %v237
  %1328 = vmatprep.subr.mxu0 %v236
  %1329 = vmatpush1.msra.mxu0 %v235
  %1330 = vmatprep.subr.mxu0 %v234
  %1331 = vmatpush1.msra.mxu0 %v233
  %1332 = vmatprep.subr.mxu0 %v232
  %1333 = vmatpush1.msra.mxu0 %v231
  %1334 = vmatprep.subr.mxu0 0.0
  %1335 = vmatpush2.msra.mxu0 0.0
  %1336 = vmatprep.subr.mxu0 0.0
  %1337 = vmatpush2.msra.mxu0 0.0
  %1338 = vmatprep.subr.mxu0 0.0
  %1339 = vmatpush2.msra.mxu0 0.0
  %1340 = vmatprep.subr.mxu0 0.0
  %1341 = vmatpush2.msra.mxu0 0.0
  %1342 = vmatprep.subr.mxu0 0.0
  %1343 = vmatpush2.msra.mxu0 0.0
  %1344 = vmatprep.subr.mxu0 0.0
  %1345 = vmatpush2.msra.mxu0 0.0
  %1346 = vmatprep.subr.mxu0 0.0
  %1347 = vmatpush2.msra.mxu0 0.0
  %1348 = vmatprep.subr.mxu0 0.0
  %1349 = vmatpush2.msra.mxu0 0.0
  %1350 = vmatprep.subr.mxu0 0.0
  %1351 = vmatpush2.msra.mxu0 0.0
  %1352 = vmatprep.subr.mxu0 0.0
  %1353 = vmatpush2.msra.mxu0 0.0
  %1354 = vmatprep.subr.mxu0 0.0
  %1355 = vmatpush2.msra.mxu0 0.0
  %1356 = vmatprep.subr.mxu0 0.0
  %1357 = vmatpush2.msra.mxu0 0.0
  %1358 = vmatprep.subr.mxu0 0.0
  %1359 = vmatpush2.msra.mxu0 0.0
  %1360 = vmatprep.subr.mxu0 0.0
  %1361 = vmatpush2.msra.mxu0 0.0
  %1362 = vmatprep.subr.mxu0 0.0
  %1363 = vmatpush2.msra.mxu0 0.0
  %1364 = vmatprep.subr.mxu0 0.0
  %1365 = vmatpush2.msra.mxu0 0.0
  %1366 = vmatprep.mubr.f32.mxu0 0.0
  %1367 = vmatmul.mubr.f32.gmra.mxu0 %v1300
  %v1368 = vpop.f32.mrf.mxu0
  %v1369 = vadd.f32 0.0, %v1368
  %v1370 = vpop.f32.mrf.mxu0
  %v1371 = vadd.f32 0.0, %v1370
  %1372 = vdwg.mxu0
  %v1373 = vadd.f32 %v1298, %v1369
  %v1374 = vadd.f32 %v1299, %v1371
  %v1375 = vxor.u32 %v1373, 2147483648
  %v1376 = vmul.f32 %v1375, 1.442695
  %v1377 = vpow.pop %v1376
  %v1378 = vadd.f32 %v1377, 1.0
  %v1379 = vrcp.pop %v1378
  %v1380 = vmul.f32 1.0, %v1379
  %v1381 = vtanh.pop %v1374
  %v1382 = vxor.u32 %v1374, 2147483648
  %v1383 = vmul.f32 %v1382, 1.442695
  %v1384 = vpow.pop %v1383
  %v1385 = vadd.f32 %v1384, 1.0
  %v1386 = vrcp.pop %v1385
  %v1387 = vmul.f32 1.0, %v1386
  %v1388 = vmul.f32 %v1380, %v1190
  %v1389 = vmul.f32 %v1380, %v1381
  %1391 = vrot.lane.b32.xlu0 %v1389, 64
  %v1392 = vpop.permute.xlu0 %1391
  %v1394 = vadd.f32 %v1388, %v1392
  %v1395 = vtanh.pop %v1394
  %v1396 = vmul.f32 %v1387, %v1395
  %1398 = vrot.lane.b32.xlu0 %v1396, 64
  %v1399 = vpop.permute.xlu0 %1398
  %v1401 = vsel %vm62, %v1399, %v1290
  %1402 = vmatprep.subr.mxu0 %v381
  %1403 = vmatpush1.msra.mxu0 %v380
  %1404 = vmatprep.subr.mxu0 %v379
  %1405 = vmatpush1.msra.mxu0 %v378
  %1406 = vmatprep.subr.mxu0 %v377
  %1407 = vmatpush1.msra.mxu0 %v376
  %1408 = vmatprep.subr.mxu0 %v375
  %1409 = vmatpush1.msra.mxu0 %v374
  %1410 = vmatprep.subr.mxu0 %v373
  %1411 = vmatpush1.msra.mxu0 %v372
  %1412 = vmatprep.subr.mxu0 %v371
  %1413 = vmatpush1.msra.mxu0 %v370
  %1414 = vmatprep.subr.mxu0 %v369
  %1415 = vmatpush1.msra.mxu0 %v368
  %1416 = vmatprep.subr.mxu0 %v367
  %1417 = vmatpush1.msra.mxu0 %v366
  %1418 = vmatprep.subr.mxu0 %v365
  %1419 = vmatpush1.msra.mxu0 %v364
  %1420 = vmatprep.subr.mxu0 %v363
  %1421 = vmatpush1.msra.mxu0 %v362
  %1422 = vmatprep.subr.mxu0 %v361
  %1423 = vmatpush1.msra.mxu0 %v360
  %1424 = vmatprep.subr.mxu0 %v359
  %1425 = vmatpush1.msra.mxu0 %v358
  %1426 = vmatprep.subr.mxu0 %v357
  %1427 = vmatpush1.msra.mxu0 %v356
  %1428 = vmatprep.subr.mxu0 %v355
  %1429 = vmatpush1.msra.mxu0 %v354
  %1430 = vmatprep.subr.mxu0 %v353
  %1431 = vmatpush1.msra.mxu0 %v352
  %1432 = vmatprep.subr.mxu0 %v351
  %1433 = vmatpush1.msra.mxu0 %v350
  %1434 = vmatprep.subr.mxu0 0.0
  %1435 = vmatpush2.msra.mxu0 0.0
  %1436 = vmatprep.subr.mxu0 0.0
  %1437 = vmatpush2.msra.mxu0 0.0
  %1438 = vmatprep.subr.mxu0 0.0
  %1439 = vmatpush2.msra.mxu0 0.0
  %1440 = vmatprep.subr.mxu0 0.0
  %1441 = vmatpush2.msra.mxu0 0.0
  %1442 = vmatprep.subr.mxu0 0.0
  %1443 = vmatpush2.msra.mxu0 0.0
  %1444 = vmatprep.subr.mxu0 0.0
  %1445 = vmatpush2.msra.mxu0 0.0
  %1446 = vmatprep.subr.mxu0 0.0
  %1447 = vmatpush2.msra.mxu0 0.0
  %1448 = vmatprep.subr.mxu0 0.0
  %1449 = vmatpush2.msra.mxu0 0.0
  %1450 = vmatprep.subr.mxu0 0.0
  %1451 = vmatpush2.msra.mxu0 0.0
  %1452 = vmatprep.subr.mxu0 0.0
  %1453 = vmatpush2.msra.mxu0 0.0
  %1454 = vmatprep.subr.mxu0 0.0
  %1455 = vmatpush2.msra.mxu0 0.0
  %1456 = vmatprep.subr.mxu0 0.0
  %1457 = vmatpush2.msra.mxu0 0.0
  %1458 = vmatprep.subr.mxu0 0.0
  %1459 = vmatpush2.msra.mxu0 0.0
  %1460 = vmatprep.subr.mxu0 0.0
  %1461 = vmatpush2.msra.mxu0 0.0
  %1462 = vmatprep.subr.mxu0 0.0
  %1463 = vmatpush2.msra.mxu0 0.0
  %1464 = vmatprep.subr.mxu0 0.0
  %1465 = vmatpush2.msra.mxu0 0.0
  %1466 = vmatprep.mubr.f32.mxu0 0.0
  %1467 = vmatmul.mubr.f32.gmra.mxu0 %v1401
  %v1468 = vpop.f32.mrf.mxu0
  %v1469 = vadd.f32 %v221, %v1468
  %v1470 = vpop.f32.mrf.mxu0
  %v1471 = vadd.f32 %v225, %v1470
  %1472 = vdwg.mxu0
  %v1473 = vxor.u32 %v1469, 2147483648
  %v1474 = vmul.f32 %v1473, 1.442695
  %v1475 = vpow.pop %v1474
  %v1476 = vadd.f32 %v1475, 1.0
  %v1477 = vrcp.pop %v1476
  %v1478 = vmul.f32 1.0, %v1477
  %v1479 = vtanh.pop %v1471
  %v1480 = vxor.u32 %v1471, 2147483648
  %v1481 = vmul.f32 %v1480, 1.442695
  %v1482 = vpow.pop %v1481
  %v1483 = vadd.f32 %v1482, 1.0
  %v1484 = vrcp.pop %v1483
  %v1485 = vmul.f32 1.0, %v1484
  %v1486 = vmul.f32 %v1478, %v1288
  %v1487 = vmul.f32 %v1478, %v1479
  %1489 = vrot.lane.b32.xlu0 %v1487, 64
  %v1490 = vpop.permute.xlu0 %1489
  %v1492 = vadd.f32 %v1486, %v1490
  %v1493 = vtanh.pop %v1492
  %v1494 = vmul.f32 %v1485, %v1493
  %vm1495 = vcmp.eq.s32.totalorder %v228, 5
  %v1496 = vsel %vm1495, 1, 0
  %1497 = vset.pattern.permute.xlu0 0
  %1498 = vperm.xlu0 %1497, %v1496
  %v1499 = vpop.permute.xlu0 %1498
  %vm1500 = vcmp.eq.s32.totalorder %v1499, 1
  %v1501 = vsel %vm1500, %v1494, %v1297
  %v1502 = vld [vmem:[#allocation2 + $0x60] sm:$0xff]
  %v1503 = vld [vmem:[#allocation2 + $0x68] sm:$0xff]
  %v1504 = vsel %vm62, %v1399, 0
  %1506 = vmatprep.subr.mxu0 0.0
  %1507 = vmatpush1.msra.mxu0 0.0
  %1508 = vmatprep.subr.mxu0 0.0
  %1509 = vmatpush1.msra.mxu0 0.0
  %1510 = vmatprep.subr.mxu0 0.0
  %1511 = vmatpush1.msra.mxu0 0.0
  %1512 = vmatprep.subr.mxu0 0.0
  %1513 = vmatpush1.msra.mxu0 0.0
  %1514 = vmatprep.subr.mxu0 0.0
  %1515 = vmatpush1.msra.mxu0 0.0
  %1516 = vmatprep.subr.mxu0 0.0
  %1517 = vmatpush1.msra.mxu0 0.0
  %1518 = vmatprep.subr.mxu0 0.0
  %1519 = vmatpush1.msra.mxu0 0.0
  %1520 = vmatprep.subr.mxu0 0.0
  %1521 = vmatpush1.msra.mxu0 0.0
  %1522 = vmatprep.subr.mxu0 %v246
  %1523 = vmatpush1.msra.mxu0 %v245
  %1524 = vmatprep.subr.mxu0 %v244
  %1525 = vmatpush1.msra.mxu0 %v243
  %1526 = vmatprep.subr.mxu0 %v242
  %1527 = vmatpush1.msra.mxu0 %v241
  %1528 = vmatprep.subr.mxu0 %v240
  %1529 = vmatpush1.msra.mxu0 %v239
  %1530 = vmatprep.subr.mxu0 %v238
  %1531 = vmatpush1.msra.mxu0 %v237
  %1532 = vmatprep.subr.mxu0 %v236
  %1533 = vmatpush1.msra.mxu0 %v235
  %1534 = vmatprep.subr.mxu0 %v234
  %1535 = vmatpush1.msra.mxu0 %v233
  %1536 = vmatprep.subr.mxu0 %v232
  %1537 = vmatpush1.msra.mxu0 %v231
  %1538 = vmatprep.subr.mxu0 0.0
  %1539 = vmatpush2.msra.mxu0 0.0
  %1540 = vmatprep.subr.mxu0 0.0
  %1541 = vmatpush2.msra.mxu0 0.0
  %1542 = vmatprep.subr.mxu0 0.0
  %1543 = vmatpush2.msra.mxu0 0.0
  %1544 = vmatprep.subr.mxu0 0.0
  %1545 = vmatpush2.msra.mxu0 0.0
  %1546 = vmatprep.subr.mxu0 0.0
  %1547 = vmatpush2.msra.mxu0 0.0
  %1548 = vmatprep.subr.mxu0 0.0
  %1549 = vmatpush2.msra.mxu0 0.0
  %1550 = vmatprep.subr.mxu0 0.0
  %1551 = vmatpush2.msra.mxu0 0.0
  %1552 = vmatprep.subr.mxu0 0.0
  %1553 = vmatpush2.msra.mxu0 0.0
  %1554 = vmatprep.subr.mxu0 0.0
  %1555 = vmatpush2.msra.mxu0 0.0
  %1556 = vmatprep.subr.mxu0 0.0
  %1557 = vmatpush2.msra.mxu0 0.0
  %1558 = vmatprep.subr.mxu0 0.0
  %1559 = vmatpush2.msra.mxu0 0.0
  %1560 = vmatprep.subr.mxu0 0.0
  %1561 = vmatpush2.msra.mxu0 0.0
  %1562 = vmatprep.subr.mxu0 0.0
  %1563 = vmatpush2.msra.mxu0 0.0
  %1564 = vmatprep.subr.mxu0 0.0
  %1565 = vmatpush2.msra.mxu0 0.0
  %1566 = vmatprep.subr.mxu0 0.0
  %1567 = vmatpush2.msra.mxu0 0.0
  %1568 = vmatprep.subr.mxu0 0.0
  %1569 = vmatpush2.msra.mxu0 0.0
  %1570 = vmatprep.mubr.f32.mxu0 0.0
  %1571 = vmatmul.mubr.f32.gmra.mxu0 %v1504
  %v1572 = vpop.f32.mrf.mxu0
  %v1573 = vadd.f32 0.0, %v1572
  %v1574 = vpop.f32.mrf.mxu0
  %v1575 = vadd.f32 0.0, %v1574
  %1576 = vdwg.mxu0
  %v1577 = vadd.f32 %v1502, %v1573
  %v1578 = vadd.f32 %v1503, %v1575
  %v1579 = vxor.u32 %v1577, 2147483648
  %v1580 = vmul.f32 %v1579, 1.442695
  %v1581 = vpow.pop %v1580
  %v1582 = vadd.f32 %v1581, 1.0
  %v1583 = vrcp.pop %v1582
  %v1584 = vmul.f32 1.0, %v1583
  %v1585 = vtanh.pop %v1578
  %v1586 = vxor.u32 %v1578, 2147483648
  %v1587 = vmul.f32 %v1586, 1.442695
  %v1588 = vpow.pop %v1587
  %v1589 = vadd.f32 %v1588, 1.0
  %v1590 = vrcp.pop %v1589
  %v1591 = vmul.f32 1.0, %v1590
  %v1592 = vmul.f32 %v1584, %v1394
  %v1593 = vmul.f32 %v1584, %v1585
  %1595 = vrot.lane.b32.xlu0 %v1593, 64
  %v1596 = vpop.permute.xlu0 %1595
  %v1598 = vadd.f32 %v1592, %v1596
  %v1599 = vtanh.pop %v1598
  %v1600 = vmul.f32 %v1591, %v1599
  %1602 = vrot.lane.b32.xlu0 %v1600, 64
  %v1603 = vpop.permute.xlu0 %1602
  %v1605 = vsel %vm62, %v1603, %v1494
  %1606 = vmatprep.subr.mxu0 %v381
  %1607 = vmatpush1.msra.mxu0 %v380
  %1608 = vmatprep.subr.mxu0 %v379
  %1609 = vmatpush1.msra.mxu0 %v378
  %1610 = vmatprep.subr.mxu0 %v377
  %1611 = vmatpush1.msra.mxu0 %v376
  %1612 = vmatprep.subr.mxu0 %v375
  %1613 = vmatpush1.msra.mxu0 %v374
  %1614 = vmatprep.subr.mxu0 %v373
  %1615 = vmatpush1.msra.mxu0 %v372
  %1616 = vmatprep.subr.mxu0 %v371
  %1617 = vmatpush1.msra.mxu0 %v370
  %1618 = vmatprep.subr.mxu0 %v369
  %1619 = vmatpush1.msra.mxu0 %v368
  %1620 = vmatprep.subr.mxu0 %v367
  %1621 = vmatpush1.msra.mxu0 %v366
  %1622 = vmatprep.subr.mxu0 %v365
  %1623 = vmatpush1.msra.mxu0 %v364
  %1624 = vmatprep.subr.mxu0 %v363
  %1625 = vmatpush1.msra.mxu0 %v362
  %1626 = vmatprep.subr.mxu0 %v361
  %1627 = vmatpush1.msra.mxu0 %v360
  %1628 = vmatprep.subr.mxu0 %v359
  %1629 = vmatpush1.msra.mxu0 %v358
  %1630 = vmatprep.subr.mxu0 %v357
  %1631 = vmatpush1.msra.mxu0 %v356
  %1632 = vmatprep.subr.mxu0 %v355
  %1633 = vmatpush1.msra.mxu0 %v354
  %1634 = vmatprep.subr.mxu0 %v353
  %1635 = vmatpush1.msra.mxu0 %v352
  %1636 = vmatprep.subr.mxu0 %v351
  %1637 = vmatpush1.msra.mxu0 %v350
  %1638 = vmatprep.subr.mxu0 0.0
  %1639 = vmatpush2.msra.mxu0 0.0
  %1640 = vmatprep.subr.mxu0 0.0
  %1641 = vmatpush2.msra.mxu0 0.0
  %1642 = vmatprep.subr.mxu0 0.0
  %1643 = vmatpush2.msra.mxu0 0.0
  %1644 = vmatprep.subr.mxu0 0.0
  %1645 = vmatpush2.msra.mxu0 0.0
  %1646 = vmatprep.subr.mxu0 0.0
  %1647 = vmatpush2.msra.mxu0 0.0
  %1648 = vmatprep.subr.mxu0 0.0
  %1649 = vmatpush2.msra.mxu0 0.0
  %1650 = vmatprep.subr.mxu0 0.0
  %1651 = vmatpush2.msra.mxu0 0.0
  %1652 = vmatprep.subr.mxu0 0.0
  %1653 = vmatpush2.msra.mxu0 0.0
  %1654 = vmatprep.subr.mxu0 0.0
  %1655 = vmatpush2.msra.mxu0 0.0
  %1656 = vmatprep.subr.mxu0 0.0
  %1657 = vmatpush2.msra.mxu0 0.0
  %1658 = vmatprep.subr.mxu0 0.0
  %1659 = vmatpush2.msra.mxu0 0.0
  %1660 = vmatprep.subr.mxu0 0.0
  %1661 = vmatpush2.msra.mxu0 0.0
  %1662 = vmatprep.subr.mxu0 0.0
  %1663 = vmatpush2.msra.mxu0 0.0
  %1664 = vmatprep.subr.mxu0 0.0
  %1665 = vmatpush2.msra.mxu0 0.0
  %1666 = vmatprep.subr.mxu0 0.0
  %1667 = vmatpush2.msra.mxu0 0.0
  %1668 = vmatprep.subr.mxu0 0.0
  %1669 = vmatpush2.msra.mxu0 0.0
  %1670 = vmatprep.mubr.f32.mxu0 0.0
  %1671 = vmatmul.mubr.f32.gmra.mxu0 %v1605
  %v1672 = vpop.f32.mrf.mxu0
  %v1673 = vadd.f32 %v221, %v1672
  %v1674 = vpop.f32.mrf.mxu0
  %v1675 = vadd.f32 %v225, %v1674
  %1676 = vdwg.mxu0
  %v1677 = vxor.u32 %v1673, 2147483648
  %v1678 = vmul.f32 %v1677, 1.442695
  %v1679 = vpow.pop %v1678
  %v1680 = vadd.f32 %v1679, 1.0
  %v1681 = vrcp.pop %v1680
  %v1682 = vmul.f32 1.0, %v1681
  %v1683 = vtanh.pop %v1675
  %v1684 = vxor.u32 %v1675, 2147483648
  %v1685 = vmul.f32 %v1684, 1.442695
  %v1686 = vpow.pop %v1685
  %v1687 = vadd.f32 %v1686, 1.0
  %v1688 = vrcp.pop %v1687
  %v1689 = vmul.f32 1.0, %v1688
  %v1690 = vmul.f32 %v1682, %v1492
  %v1691 = vmul.f32 %v1682, %v1683
  %1693 = vrot.lane.b32.xlu0 %v1691, 64
  %v1694 = vpop.permute.xlu0 %1693
  %v1696 = vadd.f32 %v1690, %v1694
  %v1697 = vtanh.pop %v1696
  %v1698 = vmul.f32 %v1689, %v1697
  %vm1699 = vcmp.eq.s32.totalorder %v228, 6
  %v1700 = vsel %vm1699, 1, 0
  %1701 = vset.pattern.permute.xlu0 0
  %1702 = vperm.xlu0 %1701, %v1700
  %v1703 = vpop.permute.xlu0 %1702
  %vm1704 = vcmp.eq.s32.totalorder %v1703, 1
  %v1705 = vsel %vm1704, %v1698, %v1501
  %v1706 = vld [vmem:[#allocation2 + $0x70] sm:$0xff]
  %v1707 = vld [vmem:[#allocation2 + $0x78] sm:$0xff]
  %v1708 = vsel %vm62, %v1603, 0
  %1710 = vmatprep.subr.mxu0 0.0
  %1711 = vmatpush1.msra.mxu0 0.0
  %1712 = vmatprep.subr.mxu0 0.0
  %1713 = vmatpush1.msra.mxu0 0.0
  %1714 = vmatprep.subr.mxu0 0.0
  %1715 = vmatpush1.msra.mxu0 0.0
  %1716 = vmatprep.subr.mxu0 0.0
  %1717 = vmatpush1.msra.mxu0 0.0
  %1718 = vmatprep.subr.mxu0 0.0
  %1719 = vmatpush1.msra.mxu0 0.0
  %1720 = vmatprep.subr.mxu0 0.0
  %1721 = vmatpush1.msra.mxu0 0.0
  %1722 = vmatprep.subr.mxu0 0.0
  %1723 = vmatpush1.msra.mxu0 0.0
  %1724 = vmatprep.subr.mxu0 0.0
  %1725 = vmatpush1.msra.mxu0 0.0
  %1726 = vmatprep.subr.mxu0 %v246
  %1727 = vmatpush1.msra.mxu0 %v245
  %1728 = vmatprep.subr.mxu0 %v244
  %1729 = vmatpush1.msra.mxu0 %v243
  %1730 = vmatprep.subr.mxu0 %v242
  %1731 = vmatpush1.msra.mxu0 %v241
  %1732 = vmatprep.subr.mxu0 %v240
  %1733 = vmatpush1.msra.mxu0 %v239
  %1734 = vmatprep.subr.mxu0 %v238
  %1735 = vmatpush1.msra.mxu0 %v237
  %1736 = vmatprep.subr.mxu0 %v236
  %1737 = vmatpush1.msra.mxu0 %v235
  %1738 = vmatprep.subr.mxu0 %v234
  %1739 = vmatpush1.msra.mxu0 %v233
  %1740 = vmatprep.subr.mxu0 %v232
  %1741 = vmatpush1.msra.mxu0 %v231
  %1742 = vmatprep.subr.mxu0 0.0
  %1743 = vmatpush2.msra.mxu0 0.0
  %1744 = vmatprep.subr.mxu0 0.0
  %1745 = vmatpush2.msra.mxu0 0.0
  %1746 = vmatprep.subr.mxu0 0.0
  %1747 = vmatpush2.msra.mxu0 0.0
  %1748 = vmatprep.subr.mxu0 0.0
  %1749 = vmatpush2.msra.mxu0 0.0
  %1750 = vmatprep.subr.mxu0 0.0
  %1751 = vmatpush2.msra.mxu0 0.0
  %1752 = vmatprep.subr.mxu0 0.0
  %1753 = vmatpush2.msra.mxu0 0.0
  %1754 = vmatprep.subr.mxu0 0.0
  %1755 = vmatpush2.msra.mxu0 0.0
  %1756 = vmatprep.subr.mxu0 0.0
  %1757 = vmatpush2.msra.mxu0 0.0
  %1758 = vmatprep.subr.mxu0 0.0
  %1759 = vmatpush2.msra.mxu0 0.0
  %1760 = vmatprep.subr.mxu0 0.0
  %1761 = vmatpush2.msra.mxu0 0.0
  %1762 = vmatprep.subr.mxu0 0.0
  %1763 = vmatpush2.msra.mxu0 0.0
  %1764 = vmatprep.subr.mxu0 0.0
  %1765 = vmatpush2.msra.mxu0 0.0
  %1766 = vmatprep.subr.mxu0 0.0
  %1767 = vmatpush2.msra.mxu0 0.0
  %1768 = vmatprep.subr.mxu0 0.0
  %1769 = vmatpush2.msra.mxu0 0.0
  %1770 = vmatprep.subr.mxu0 0.0
  %1771 = vmatpush2.msra.mxu0 0.0
  %1772 = vmatprep.subr.mxu0 0.0
  %1773 = vmatpush2.msra.mxu0 0.0
  %1774 = vmatprep.mubr.f32.mxu0 0.0
  %1775 = vmatmul.mubr.f32.gmra.mxu0 %v1708
  %v1776 = vpop.f32.mrf.mxu0
  %v1777 = vadd.f32 0.0, %v1776
  %v1778 = vpop.f32.mrf.mxu0
  %v1779 = vadd.f32 0.0, %v1778
  %1780 = vdwg.mxu0
  %v1781 = vadd.f32 %v1706, %v1777
  %v1782 = vadd.f32 %v1707, %v1779
  %v1783 = vxor.u32 %v1781, 2147483648
  %v1784 = vmul.f32 %v1783, 1.442695
  %v1785 = vpow.pop %v1784
  %v1786 = vadd.f32 %v1785, 1.0
  %v1787 = vrcp.pop %v1786
  %v1788 = vmul.f32 1.0, %v1787
  %v1789 = vtanh.pop %v1782
  %v1790 = vxor.u32 %v1782, 2147483648
  %v1791 = vmul.f32 %v1790, 1.442695
  %v1792 = vpow.pop %v1791
  %v1793 = vadd.f32 %v1792, 1.0
  %v1794 = vrcp.pop %v1793
  %v1795 = vmul.f32 1.0, %v1794
  %v1796 = vmul.f32 %v1788, %v1598
  %v1797 = vmul.f32 %v1788, %v1789
  %1799 = vrot.lane.b32.xlu0 %v1797, 64
  %v1800 = vpop.permute.xlu0 %1799
  %v1802 = vadd.f32 %v1796, %v1800
  %v1803 = vtanh.pop %v1802
  %v1804 = vmul.f32 %v1795, %v1803
  %1806 = vrot.lane.b32.xlu0 %v1804, 64
  %v1807 = vpop.permute.xlu0 %1806
  %v1809 = vsel %vm62, %v1807, %v1698
  %1810 = vmatprep.subr.mxu0 %v381
  %1811 = vmatpush1.msra.mxu0 %v380
  %1812 = vmatprep.subr.mxu0 %v379
  %1813 = vmatpush1.msra.mxu0 %v378
  %1814 = vmatprep.subr.mxu0 %v377
  %1815 = vmatpush1.msra.mxu0 %v376
  %1816 = vmatprep.subr.mxu0 %v375
  %1817 = vmatpush1.msra.mxu0 %v374
  %1818 = vmatprep.subr.mxu0 %v373
  %1819 = vmatpush1.msra.mxu0 %v372
  %1820 = vmatprep.subr.mxu0 %v371
  %1821 = vmatpush1.msra.mxu0 %v370
  %1822 = vmatprep.subr.mxu0 %v369
  %1823 = vmatpush1.msra.mxu0 %v368
  %1824 = vmatprep.subr.mxu0 %v367
  %1825 = vmatpush1.msra.mxu0 %v366
  %1826 = vmatprep.subr.mxu0 %v365
  %1827 = vmatpush1.msra.mxu0 %v364
  %1828 = vmatprep.subr.mxu0 %v363
  %1829 = vmatpush1.msra.mxu0 %v362
  %1830 = vmatprep.subr.mxu0 %v361
  %1831 = vmatpush1.msra.mxu0 %v360
  %1832 = vmatprep.subr.mxu0 %v359
  %1833 = vmatpush1.msra.mxu0 %v358
  %1834 = vmatprep.subr.mxu0 %v357
  %1835 = vmatpush1.msra.mxu0 %v356
  %1836 = vmatprep.subr.mxu0 %v355
  %1837 = vmatpush1.msra.mxu0 %v354
  %1838 = vmatprep.subr.mxu0 %v353
  %1839 = vmatpush1.msra.mxu0 %v352
  %1840 = vmatprep.subr.mxu0 %v351
  %1841 = vmatpush1.msra.mxu0 %v350
  %1842 = vmatprep.subr.mxu0 0.0
  %1843 = vmatpush2.msra.mxu0 0.0
  %1844 = vmatprep.subr.mxu0 0.0
  %1845 = vmatpush2.msra.mxu0 0.0
  %1846 = vmatprep.subr.mxu0 0.0
  %1847 = vmatpush2.msra.mxu0 0.0
  %1848 = vmatprep.subr.mxu0 0.0
  %1849 = vmatpush2.msra.mxu0 0.0
  %1850 = vmatprep.subr.mxu0 0.0
  %1851 = vmatpush2.msra.mxu0 0.0
  %1852 = vmatprep.subr.mxu0 0.0
  %1853 = vmatpush2.msra.mxu0 0.0
  %1854 = vmatprep.subr.mxu0 0.0
  %1855 = vmatpush2.msra.mxu0 0.0
  %1856 = vmatprep.subr.mxu0 0.0
  %1857 = vmatpush2.msra.mxu0 0.0
  %1858 = vmatprep.subr.mxu0 0.0
  %1859 = vmatpush2.msra.mxu0 0.0
  %1860 = vmatprep.subr.mxu0 0.0
  %1861 = vmatpush2.msra.mxu0 0.0
  %1862 = vmatprep.subr.mxu0 0.0
  %1863 = vmatpush2.msra.mxu0 0.0
  %1864 = vmatprep.subr.mxu0 0.0
  %1865 = vmatpush2.msra.mxu0 0.0
  %1866 = vmatprep.subr.mxu0 0.0
  %1867 = vmatpush2.msra.mxu0 0.0
  %1868 = vmatprep.subr.mxu0 0.0
  %1869 = vmatpush2.msra.mxu0 0.0
  %1870 = vmatprep.subr.mxu0 0.0
  %1871 = vmatpush2.msra.mxu0 0.0
  %1872 = vmatprep.subr.mxu0 0.0
  %1873 = vmatpush2.msra.mxu0 0.0
  %1874 = vmatprep.mubr.f32.mxu0 0.0
  %1875 = vmatmul.mubr.f32.gmra.mxu0 %v1809
  %v1876 = vpop.f32.mrf.mxu0
  %v1877 = vadd.f32 %v221, %v1876
  %v1878 = vpop.f32.mrf.mxu0
  %v1879 = vadd.f32 %v225, %v1878
  %1880 = vdwg.mxu0
  %v1881 = vxor.u32 %v1877, 2147483648
  %v1882 = vmul.f32 %v1881, 1.442695
  %v1883 = vpow.pop %v1882
  %v1884 = vadd.f32 %v1883, 1.0
  %v1885 = vrcp.pop %v1884
  %v1886 = vmul.f32 1.0, %v1885
  %v1887 = vtanh.pop %v1879
  %v1888 = vxor.u32 %v1879, 2147483648
  %v1889 = vmul.f32 %v1888, 1.442695
  %v1890 = vpow.pop %v1889
  %v1891 = vadd.f32 %v1890, 1.0
  %v1892 = vrcp.pop %v1891
  %v1893 = vmul.f32 1.0, %v1892
  %v1894 = vmul.f32 %v1886, %v1696
  %v1895 = vmul.f32 %v1886, %v1887
  %1897 = vrot.lane.b32.xlu0 %v1895, 64
  %v1898 = vpop.permute.xlu0 %1897
  %v1900 = vadd.f32 %v1894, %v1898
  %v1901 = vtanh.pop %v1900
  %v1902 = vmul.f32 %v1893, %v1901
  %vm1903 = vcmp.eq.s32.totalorder %v228, 7
  %v1904 = vsel %vm1903, 1, 0
  %1905 = vset.pattern.permute.xlu0 0
  %1906 = vperm.xlu0 %1905, %v1904
  %v1907 = vpop.permute.xlu0 %1906
  %vm1908 = vcmp.eq.s32.totalorder %v1907, 1
  %v1909 = vsel %vm1908, %v1902, %v1705
  %1911 = vrot.lane.b32.xlu0 %v1909, 64
  %v1912 = vpop.permute.xlu0 %1911
  %1914 = vst.msk [vmem:[%s7] sm:$0xff] %vm62, %v1912
  // Predicated region
  $region30: #{lstm_encoder_forward.1} parent=0 // pred_check
    _
  $region31: #{lstm_encoder_forward.1} parent=0 // pred_check_branch
    %1916 = sbr.rel (0) target = $region33
  $region32: #{lstm_encoder_forward.1} parent=0 // pred_region
    _
  $region33: #{lstm_encoder_forward.1} parent=0 // pred_fallthru
    _
  // Predicated region
  $region34: #{lstm_encoder_forward.1} parent=0 // pred_check
    _
  $region35: #{lstm_encoder_forward.1} parent=0 // pred_check_branch
    %1918 = sbr.rel (0) target = $region37
  $region36: #{lstm_encoder_forward.1} parent=0 // pred_region
    _
  $region37: #{lstm_encoder_forward.1} parent=0 // pred_fallthru
    _

</llo_original>
